<compile_context>
chip_gen: v7x
topology: tpu7x:2x2x1
jax: 0.10.0
libtpu: 0.0.40
codegen_flags: <defaults>
</compile_context>

<pallas_src>
import numpy as np
import jax
import jax.numpy as jnp
from jax import lax
from jax.experimental import pallas as pl
from jax.experimental.pallas import tpu as pltpu

KSIZE = 3
NEG_SLOPE = 0.2


def _reflect(i, n):
    if i < 0:
        return -i
    if i > n - 1:
        return 2 * (n - 1) - i
    return i


def _shift_matrix(C, W):
    """Static 0/1 map: conv weight (dy,dx,ci,co) -> per-(lane-shift, lane) weights.

    Returns M of shape (3, C, C, nshift, W*C) so that
        Wv[dy, t_idx, l] = sum_{dx,ci,co} w[dy,dx,ci,co] * M[dx,ci,co,t_idx,l]
    encodes the 3x3 conv AND its width-direction reflection padding as
        out[r, l] += band_dy[r, (l + t) mod L] * Wv[dy, t_idx, l],  t = tmin + t_idx.
    Lanes/terms with no valid contribution get weight 0, so roll wrap-around is
    harmless.
    """
    L = W * C
    nshift = 4 * C - 1
    tmin = -(2 * C - 1)
    M = np.zeros((KSIZE, C, C, nshift, L), np.float32)
    for dx in range(KSIZE):
        for ci in range(C):
            for co in range(C):
                for wo in range(W):
                    ws = _reflect(wo + dx - 1, W)          # width reflect pad
                    t = (ws - wo) * C + (ci - co)
                    M[dx, ci, co, t - tmin, wo * C + co] += 1.0
    return M


def _make_kernel(Lpad, C):
    nshift = 4 * C - 1
    tmin = -(2 * C - 1)
    # roll amount s such that roll(x, s)[l] == x[(l + t) mod Lpad]
    roll_amts = [(-(tmin + k)) % Lpad for k in range(nshift)]

    def conv3x3(inp, wv, bias):
        # 1-row reflection padding handled by the row bands (stays in vregs).
        band_up = jnp.concatenate([inp[1:2], inp[:-1]], axis=0)    # x[r-1]
        band_dn = jnp.concatenate([inp[1:], inp[-2:-1]], axis=0)   # x[r+1]
        bands = (band_up, inp, band_dn)
        acc = jnp.zeros_like(inp)
        for dy in range(KSIZE):
            band = bands[dy]
            for k, s in enumerate(roll_amts):
                shifted = band if s == 0 else pltpu.roll(band, s, axis=1)
                row = dy * nshift + k
                acc = acc + shifted * wv[row:row + 1, :]            # VPU FMA
        return acc + bias

    def kernel(x_ref, wv1_ref, b1_ref, wv2_ref, b2_ref, o_ref):
        x = x_ref[0]                                   # (H, Lpad) f32, lane-dense
        h = conv3x3(x, wv1_ref[...], b1_ref[...])
        h = jnp.where(h >= 0.0, h, NEG_SLOPE * h)      # LeakyReLU(0.2)
        y = conv3x3(h, wv2_ref[...], b2_ref[...])
        o_ref[0] = (y + x).astype(o_ref.dtype)         # + residual

    return kernel


def residual_block0(x_nchw, w1, b1, w2, b2):
    """x_nchw: (N, C, H, W); conv weights HWIO (3,3,C,C); biases (C,) or (1,C)."""
    N, C, H, W = x_nchw.shape
    assert H >= 2 and W >= 2, "ReflectionPad2d(1) needs spatial dims >= 2"
    L = W * C
    Lpad = ((L + 127) // 128) * 128                    # lane-dense, mult of 128
    nshift = 4 * C - 1

    # NCHW -> (N, H, W*C) lane-dense rows (zero padding only on the lane axis;
    # the reflect padding itself is folded into the kernel / weight vectors).
    x = jnp.transpose(x_nchw, (0, 2, 3, 1)).astype(jnp.float32).reshape(N, H, L)
    x = jnp.pad(x, ((0, 0), (0, 0), (0, Lpad - L)))

    M = jnp.asarray(_shift_matrix(C, W))

    def shift_weights(w):
        wv = jnp.einsum("yxio,xiotl->ytl", w.astype(jnp.float32), M,
                        precision=lax.Precision.HIGHEST)
        wv = wv.reshape(KSIZE * nshift, L)
        return jnp.pad(wv, ((0, 0), (0, Lpad - L)))

    def lane_bias(b):
        bv = jnp.tile(jnp.ravel(b).astype(jnp.float32), W).reshape(1, L)
        return jnp.pad(bv, ((0, 0), (0, Lpad - L)))

    wv1, wv2 = shift_weights(w1), shift_weights(w2)
    b1v, b2v = lane_bias(b1), lane_bias(b2)

    kernel = _make_kernel(Lpad, C)

    img_bytes = H * Lpad * 4
    w_bytes = 2 * (KSIZE * nshift + 1) * Lpad * 4
    flops = 4 * KSIZE * KSIZE * C * C * H * W * N             # 2 convs, mul+add
    bytes_accessed = 2 * N * img_bytes + w_bytes
    vmem_limit = int(min(max(6 * img_bytes + w_bytes + (2 << 20), 32 << 20),
                         64 << 20))                           # v7x ceiling

    out = pl.pallas_call(
        kernel,
        out_shape=jax.ShapeDtypeStruct((N, H, Lpad), jnp.float32),
        grid_spec=pltpu.PrefetchScalarGridSpec(
            num_scalar_prefetch=0,
            grid=(N,),
            in_specs=[
                pl.BlockSpec((1, H, Lpad), lambda n: (n, 0, 0)),          # image n
                pl.BlockSpec((KSIZE * nshift, Lpad), lambda n: (0, 0)),   # Wv1
                pl.BlockSpec((1, Lpad), lambda n: (0, 0)),                # b1
                pl.BlockSpec((KSIZE * nshift, Lpad), lambda n: (0, 0)),   # Wv2
                pl.BlockSpec((1, Lpad), lambda n: (0, 0)),                # b2
            ],
            out_specs=pl.BlockSpec((1, H, Lpad), lambda n: (n, 0, 0)),
        ),
        compiler_params=pltpu.CompilerParams(
            dimension_semantics=("parallel",),     # batch shards across TCs (v7x)
            vmem_limit_bytes=vmem_limit,
        ),
        cost_estimate=pl.CostEstimate(flops=flops, transcendentals=0,
                                      bytes_accessed=bytes_accessed),
    )(x, wv1, b1v, wv2, b2v)

    out = out[:, :, :L].reshape(N, H, W, C)
    return jnp.transpose(out, (0, 3, 1, 2))                   # back to NCHW


# ---------------- reference (plain JAX) for verification ----------------
def _ref_block(x_nchw, w1, b1, w2, b2):
    x = jnp.transpose(x_nchw, (0, 2, 3, 1)).astype(jnp.float32)

    def conv(inp, w, b):
        p = jnp.pad(inp, ((0, 0), (1, 1), (1, 1), (0, 0)), mode="reflect")
        y = lax.conv_general_dilated(
            p, w.astype(jnp.float32), window_strides=(1, 1), padding="VALID",
            dimension_numbers=("NHWC", "HWIO", "NHWC"),
            precision=lax.Precision.HIGHEST)
        return y + jnp.ravel(b).reshape(1, 1, 1, -1)

    h = conv(x, w1, b1)
    h = jnp.where(h >= 0, h, NEG_SLOPE * h)
    o = conv(h, w2, b2) + x
    return jnp.transpose(o, (0, 3, 1, 2))


if __name__ == "__main__":
    key = jax.random.PRNGKey(0)

    def run_case(case_key, N, C, H, W):
        k = jax.random.split(case_key, 5)
        x = jax.random.normal(k[0], (N, C, H, W), jnp.float32)
        fan_in = C * KSIZE * KSIZE
        bound = 1.0 / (fan_in ** 0.5)
        w1 = jax.random.uniform(k[1], (KSIZE, KSIZE, C, C), jnp.float32, -bound, bound)
        b1 = jax.random.uniform(k[2], (1, C), jnp.float32, -bound, bound)
        w2 = jax.random.uniform(k[3], (KSIZE, KSIZE, C, C), jnp.float32, -bound, bound)
        b2 = jax.random.uniform(k[4], (1, C), jnp.float32, -bound, bound)

        out = jax.block_until_ready(residual_block0(x, w1, b1, w2, b2))
        ref = jax.block_until_ready(_ref_block(x, w1, b1, w2, b2))
        assert out.shape == (N, C, H, W)
        err = float(jnp.max(jnp.abs(out - ref)))
        assert jnp.allclose(out, ref, atol=1e-4, rtol=1e-4), \
            f"mismatch vs reference for shape {(N, C, H, W)}: max_err={err}"

    # primary shape implied by the module (batch=2, channels=4, 16x16 frames)
    run_case(jax.random.fold_in(key, 0), 2, 4, 16, 16)
    # non-square frame, W*C < 128 (exercises lane padding)
    run_case(jax.random.fold_in(key, 1), 1, 4, 24, 8)
    # different channel count (more lane shifts per conv)
    run_case(jax.random.fold_in(key, 2), 2, 8, 16, 8)

    print("KERNEL_OK")
</pallas_src>

<mosaic_0001>
module attributes {stable_mosaic.version = 11 : i64} {
  func.func @kernel(%arg0: i32, %arg1: memref<1x16x128xf32, #tpu.memory_space<vmem>>, %arg2: memref<45x128xf32, #tpu.memory_space<vmem>>, %arg3: memref<1x128xf32, #tpu.memory_space<vmem>>, %arg4: memref<45x128xf32, #tpu.memory_space<vmem>>, %arg5: memref<1x128xf32, #tpu.memory_space<vmem>>, %arg6: memref<1x16x128xf32, #tpu.memory_space<vmem>>) attributes {dimension_semantics = [#tpu.dimension_semantics<parallel>], iteration_bounds = array<i64: 2>, scalar_prefetch = 0 : i64, scratch_operands = 0 : i64, tpu.core_type = #tpu.core_type<tc>, window_params = [{transform_indices = @transform_0, window_bounds = array<i64: 1, 16, 128>}, {pipeline_mode = #tpu.pipeline_mode<synchronous>, transform_indices = @transform_1, window_bounds = array<i64: 45, 128>}, {pipeline_mode = #tpu.pipeline_mode<synchronous>, transform_indices = @transform_2, window_bounds = array<i64: 1, 128>}, {pipeline_mode = #tpu.pipeline_mode<synchronous>, transform_indices = @transform_3, window_bounds = array<i64: 45, 128>}, {pipeline_mode = #tpu.pipeline_mode<synchronous>, transform_indices = @transform_4, window_bounds = array<i64: 1, 128>}, {transform_indices = @transform_5, window_bounds = array<i64: 1, 16, 128>}]} {
    %c0 = arith.constant 0 : index
    %c0_0 = arith.constant 0 : index
    %c0_1 = arith.constant 0 : index
    %0 = vector.load %arg1[%c0, %c0_0, %c0_1] : memref<1x16x128xf32, #tpu.memory_space<vmem>>, vector<1x16x128xf32>
    %1 = vector.shape_cast %0 : vector<1x16x128xf32> to vector<16x128xf32>
    %c0_2 = arith.constant 0 : index
    %c0_3 = arith.constant 0 : index
    %2 = vector.load %arg2[%c0_2, %c0_3] : memref<45x128xf32, #tpu.memory_space<vmem>>, vector<45x128xf32>
    %c0_4 = arith.constant 0 : index
    %c0_5 = arith.constant 0 : index
    %3 = vector.load %arg3[%c0_4, %c0_5] : memref<1x128xf32, #tpu.memory_space<vmem>>, vector<1x128xf32>
    %4 = vector.extract_strided_slice %1 {offsets = [1, 0], sizes = [1, 128], strides = [1, 1]} : vector<16x128xf32> to vector<1x128xf32>
    %5 = vector.extract_strided_slice %1 {offsets = [0, 0], sizes = [15, 128], strides = [1, 1]} : vector<16x128xf32> to vector<15x128xf32>
    %6 = tpu.concatenate %4, %5 in 0 : vector<1x128xf32>, vector<15x128xf32> -> vector<16x128xf32>
    %7 = vector.extract_strided_slice %1 {offsets = [1, 0], sizes = [15, 128], strides = [1, 1]} : vector<16x128xf32> to vector<15x128xf32>
    %8 = vector.extract_strided_slice %1 {offsets = [14, 0], sizes = [1, 128], strides = [1, 1]} : vector<16x128xf32> to vector<1x128xf32>
    %9 = tpu.concatenate %7, %8 in 0 : vector<15x128xf32>, vector<1x128xf32> -> vector<16x128xf32>
    %cst = arith.constant 0.000000e+00 : f32
    %10 = vector.broadcast %cst : f32 to vector<16x128xf32>
    %c7_i32 = arith.constant 7 : i32
    %11 = tpu.dynamic_rotate %6 by %c7_i32 dim 1 : vector<16x128xf32>, i32 -> vector<16x128xf32>
    %12 = vector.extract_strided_slice %2 {offsets = [0, 0], sizes = [1, 128], strides = [1, 1]} : vector<45x128xf32> to vector<1x128xf32>
    %13 = vector.broadcast %12 : vector<1x128xf32> to vector<16x128xf32>
    %14 = arith.mulf %11, %13 : vector<16x128xf32>
    %15 = arith.addf %10, %14 : vector<16x128xf32>
    %c6_i32 = arith.constant 6 : i32
    %16 = tpu.dynamic_rotate %6 by %c6_i32 dim 1 : vector<16x128xf32>, i32 -> vector<16x128xf32>
    %17 = vector.extract_strided_slice %2 {offsets = [1, 0], sizes = [1, 128], strides = [1, 1]} : vector<45x128xf32> to vector<1x128xf32>
    %18 = vector.broadcast %17 : vector<1x128xf32> to vector<16x128xf32>
    %19 = arith.mulf %16, %18 : vector<16x128xf32>
    %20 = arith.addf %15, %19 : vector<16x128xf32>
    %c5_i32 = arith.constant 5 : i32
    %21 = tpu.dynamic_rotate %6 by %c5_i32 dim 1 : vector<16x128xf32>, i32 -> vector<16x128xf32>
    %22 = vector.extract_strided_slice %2 {offsets = [2, 0], sizes = [1, 128], strides = [1, 1]} : vector<45x128xf32> to vector<1x128xf32>
    %23 = vector.broadcast %22 : vector<1x128xf32> to vector<16x128xf32>
    %24 = arith.mulf %21, %23 : vector<16x128xf32>
    %25 = arith.addf %20, %24 : vector<16x128xf32>
    %c4_i32 = arith.constant 4 : i32
    %26 = tpu.dynamic_rotate %6 by %c4_i32 dim 1 : vector<16x128xf32>, i32 -> vector<16x128xf32>
    %27 = vector.extract_strided_slice %2 {offsets = [3, 0], sizes = [1, 128], strides = [1, 1]} : vector<45x128xf32> to vector<1x128xf32>
    %28 = vector.broadcast %27 : vector<1x128xf32> to vector<16x128xf32>
    %29 = arith.mulf %26, %28 : vector<16x128xf32>
    %30 = arith.addf %25, %29 : vector<16x128xf32>
    %c3_i32 = arith.constant 3 : i32
    %31 = tpu.dynamic_rotate %6 by %c3_i32 dim 1 : vector<16x128xf32>, i32 -> vector<16x128xf32>
    %32 = vector.extract_strided_slice %2 {offsets = [4, 0], sizes = [1, 128], strides = [1, 1]} : vector<45x128xf32> to vector<1x128xf32>
    %33 = vector.broadcast %32 : vector<1x128xf32> to vector<16x128xf32>
    %34 = arith.mulf %31, %33 : vector<16x128xf32>
    %35 = arith.addf %30, %34 : vector<16x128xf32>
    %c2_i32 = arith.constant 2 : i32
    %36 = tpu.dynamic_rotate %6 by %c2_i32 dim 1 : vector<16x128xf32>, i32 -> vector<16x128xf32>
    %37 = vector.extract_strided_slice %2 {offsets = [5, 0], sizes = [1, 128], strides = [1, 1]} : vector<45x128xf32> to vector<1x128xf32>
    %38 = vector.broadcast %37 : vector<1x128xf32> to vector<16x128xf32>
    %39 = arith.mulf %36, %38 : vector<16x128xf32>
    %40 = arith.addf %35, %39 : vector<16x128xf32>
    %c1_i32 = arith.constant 1 : i32
    %41 = tpu.dynamic_rotate %6 by %c1_i32 dim 1 : vector<16x128xf32>, i32 -> vector<16x128xf32>
    %42 = vector.extract_strided_slice %2 {offsets = [6, 0], sizes = [1, 128], strides = [1, 1]} : vector<45x128xf32> to vector<1x128xf32>
    %43 = vector.broadcast %42 : vector<1x128xf32> to vector<16x128xf32>
    %44 = arith.mulf %41, %43 : vector<16x128xf32>
    %45 = arith.addf %40, %44 : vector<16x128xf32>
    %46 = vector.extract_strided_slice %2 {offsets = [7, 0], sizes = [1, 128], strides = [1, 1]} : vector<45x128xf32> to vector<1x128xf32>
    %47 = vector.broadcast %46 : vector<1x128xf32> to vector<16x128xf32>
    %48 = arith.mulf %6, %47 : vector<16x128xf32>
    %49 = arith.addf %45, %48 : vector<16x128xf32>
    %c127_i32 = arith.constant 127 : i32
    %50 = tpu.dynamic_rotate %6 by %c127_i32 dim 1 : vector<16x128xf32>, i32 -> vector<16x128xf32>
    %51 = vector.extract_strided_slice %2 {offsets = [8, 0], sizes = [1, 128], strides = [1, 1]} : vector<45x128xf32> to vector<1x128xf32>
    %52 = vector.broadcast %51 : vector<1x128xf32> to vector<16x128xf32>
    %53 = arith.mulf %50, %52 : vector<16x128xf32>
    %54 = arith.addf %49, %53 : vector<16x128xf32>
    %c126_i32 = arith.constant 126 : i32
    %55 = tpu.dynamic_rotate %6 by %c126_i32 dim 1 : vector<16x128xf32>, i32 -> vector<16x128xf32>
    %56 = vector.extract_strided_slice %2 {offsets = [9, 0], sizes = [1, 128], strides = [1, 1]} : vector<45x128xf32> to vector<1x128xf32>
    %57 = vector.broadcast %56 : vector<1x128xf32> to vector<16x128xf32>
    %58 = arith.mulf %55, %57 : vector<16x128xf32>
    %59 = arith.addf %54, %58 : vector<16x128xf32>
    %c125_i32 = arith.constant 125 : i32
    %60 = tpu.dynamic_rotate %6 by %c125_i32 dim 1 : vector<16x128xf32>, i32 -> vector<16x128xf32>
    %61 = vector.extract_strided_slice %2 {offsets = [10, 0], sizes = [1, 128], strides = [1, 1]} : vector<45x128xf32> to vector<1x128xf32>
    %62 = vector.broadcast %61 : vector<1x128xf32> to vector<16x128xf32>
    %63 = arith.mulf %60, %62 : vector<16x128xf32>
    %64 = arith.addf %59, %63 : vector<16x128xf32>
    %c124_i32 = arith.constant 124 : i32
    %65 = tpu.dynamic_rotate %6 by %c124_i32 dim 1 : vector<16x128xf32>, i32 -> vector<16x128xf32>
    %66 = vector.extract_strided_slice %2 {offsets = [11, 0], sizes = [1, 128], strides = [1, 1]} : vector<45x128xf32> to vector<1x128xf32>
    %67 = vector.broadcast %66 : vector<1x128xf32> to vector<16x128xf32>
    %68 = arith.mulf %65, %67 : vector<16x128xf32>
    %69 = arith.addf %64, %68 : vector<16x128xf32>
    %c123_i32 = arith.constant 123 : i32
    %70 = tpu.dynamic_rotate %6 by %c123_i32 dim 1 : vector<16x128xf32>, i32 -> vector<16x128xf32>
    %71 = vector.extract_strided_slice %2 {offsets = [12, 0], sizes = [1, 128], strides = [1, 1]} : vector<45x128xf32> to vector<1x128xf32>
    %72 = vector.broadcast %71 : vector<1x128xf32> to vector<16x128xf32>
    %73 = arith.mulf %70, %72 : vector<16x128xf32>
    %74 = arith.addf %69, %73 : vector<16x128xf32>
    %c122_i32 = arith.constant 122 : i32
    %75 = tpu.dynamic_rotate %6 by %c122_i32 dim 1 : vector<16x128xf32>, i32 -> vector<16x128xf32>
    %76 = vector.extract_strided_slice %2 {offsets = [13, 0], sizes = [1, 128], strides = [1, 1]} : vector<45x128xf32> to vector<1x128xf32>
    %77 = vector.broadcast %76 : vector<1x128xf32> to vector<16x128xf32>
    %78 = arith.mulf %75, %77 : vector<16x128xf32>
    %79 = arith.addf %74, %78 : vector<16x128xf32>
    %c121_i32 = arith.constant 121 : i32
    %80 = tpu.dynamic_rotate %6 by %c121_i32 dim 1 : vector<16x128xf32>, i32 -> vector<16x128xf32>
    %81 = vector.extract_strided_slice %2 {offsets = [14, 0], sizes = [1, 128], strides = [1, 1]} : vector<45x128xf32> to vector<1x128xf32>
    %82 = vector.broadcast %81 : vector<1x128xf32> to vector<16x128xf32>
    %83 = arith.mulf %80, %82 : vector<16x128xf32>
    %84 = arith.addf %79, %83 : vector<16x128xf32>
    %c7_i32_6 = arith.constant 7 : i32
    %85 = tpu.dynamic_rotate %1 by %c7_i32_6 dim 1 : vector<16x128xf32>, i32 -> vector<16x128xf32>
    %86 = vector.extract_strided_slice %2 {offsets = [15, 0], sizes = [1, 128], strides = [1, 1]} : vector<45x128xf32> to vector<1x128xf32>
    %87 = vector.broadcast %86 : vector<1x128xf32> to vector<16x128xf32>
    %88 = arith.mulf %85, %87 : vector<16x128xf32>
    %89 = arith.addf %84, %88 : vector<16x128xf32>
    %c6_i32_7 = arith.constant 6 : i32
    %90 = tpu.dynamic_rotate %1 by %c6_i32_7 dim 1 : vector<16x128xf32>, i32 -> vector<16x128xf32>
    %91 = vector.extract_strided_slice %2 {offsets = [16, 0], sizes = [1, 128], strides = [1, 1]} : vector<45x128xf32> to vector<1x128xf32>
    %92 = vector.broadcast %91 : vector<1x128xf32> to vector<16x128xf32>
    %93 = arith.mulf %90, %92 : vector<16x128xf32>
    %94 = arith.addf %89, %93 : vector<16x128xf32>
    %c5_i32_8 = arith.constant 5 : i32
    %95 = tpu.dynamic_rotate %1 by %c5_i32_8 dim 1 : vector<16x128xf32>, i32 -> vector<16x128xf32>
    %96 = vector.extract_strided_slice %2 {offsets = [17, 0], sizes = [1, 128], strides = [1, 1]} : vector<45x128xf32> to vector<1x128xf32>
    %97 = vector.broadcast %96 : vector<1x128xf32> to vector<16x128xf32>
    %98 = arith.mulf %95, %97 : vector<16x128xf32>
    %99 = arith.addf %94, %98 : vector<16x128xf32>
    %c4_i32_9 = arith.constant 4 : i32
    %100 = tpu.dynamic_rotate %1 by %c4_i32_9 dim 1 : vector<16x128xf32>, i32 -> vector<16x128xf32>
    %101 = vector.extract_strided_slice %2 {offsets = [18, 0], sizes = [1, 128], strides = [1, 1]} : vector<45x128xf32> to vector<1x128xf32>
    %102 = vector.broadcast %101 : vector<1x128xf32> to vector<16x128xf32>
    %103 = arith.mulf %100, %102 : vector<16x128xf32>
    %104 = arith.addf %99, %103 : vector<16x128xf32>
    %c3_i32_10 = arith.constant 3 : i32
    %105 = tpu.dynamic_rotate %1 by %c3_i32_10 dim 1 : vector<16x128xf32>, i32 -> vector<16x128xf32>
    %106 = vector.extract_strided_slice %2 {offsets = [19, 0], sizes = [1, 128], strides = [1, 1]} : vector<45x128xf32> to vector<1x128xf32>
    %107 = vector.broadcast %106 : vector<1x128xf32> to vector<16x128xf32>
    %108 = arith.mulf %105, %107 : vector<16x128xf32>
    %109 = arith.addf %104, %108 : vector<16x128xf32>
    %c2_i32_11 = arith.constant 2 : i32
    %110 = tpu.dynamic_rotate %1 by %c2_i32_11 dim 1 : vector<16x128xf32>, i32 -> vector<16x128xf32>
    %111 = vector.extract_strided_slice %2 {offsets = [20, 0], sizes = [1, 128], strides = [1, 1]} : vector<45x128xf32> to vector<1x128xf32>
    %112 = vector.broadcast %111 : vector<1x128xf32> to vector<16x128xf32>
    %113 = arith.mulf %110, %112 : vector<16x128xf32>
    %114 = arith.addf %109, %113 : vector<16x128xf32>
    %c1_i32_12 = arith.constant 1 : i32
    %115 = tpu.dynamic_rotate %1 by %c1_i32_12 dim 1 : vector<16x128xf32>, i32 -> vector<16x128xf32>
    %116 = vector.extract_strided_slice %2 {offsets = [21, 0], sizes = [1, 128], strides = [1, 1]} : vector<45x128xf32> to vector<1x128xf32>
    %117 = vector.broadcast %116 : vector<1x128xf32> to vector<16x128xf32>
    %118 = arith.mulf %115, %117 : vector<16x128xf32>
    %119 = arith.addf %114, %118 : vector<16x128xf32>
    %120 = vector.extract_strided_slice %2 {offsets = [22, 0], sizes = [1, 128], strides = [1, 1]} : vector<45x128xf32> to vector<1x128xf32>
    %121 = vector.broadcast %120 : vector<1x128xf32> to vector<16x128xf32>
    %122 = arith.mulf %1, %121 : vector<16x128xf32>
    %123 = arith.addf %119, %122 : vector<16x128xf32>
    %c127_i32_13 = arith.constant 127 : i32
    %124 = tpu.dynamic_rotate %1 by %c127_i32_13 dim 1 : vector<16x128xf32>, i32 -> vector<16x128xf32>
    %125 = vector.extract_strided_slice %2 {offsets = [23, 0], sizes = [1, 128], strides = [1, 1]} : vector<45x128xf32> to vector<1x128xf32>
    %126 = vector.broadcast %125 : vector<1x128xf32> to vector<16x128xf32>
    %127 = arith.mulf %124, %126 : vector<16x128xf32>
    %128 = arith.addf %123, %127 : vector<16x128xf32>
    %c126_i32_14 = arith.constant 126 : i32
    %129 = tpu.dynamic_rotate %1 by %c126_i32_14 dim 1 : vector<16x128xf32>, i32 -> vector<16x128xf32>
    %130 = vector.extract_strided_slice %2 {offsets = [24, 0], sizes = [1, 128], strides = [1, 1]} : vector<45x128xf32> to vector<1x128xf32>
    %131 = vector.broadcast %130 : vector<1x128xf32> to vector<16x128xf32>
    %132 = arith.mulf %129, %131 : vector<16x128xf32>
    %133 = arith.addf %128, %132 : vector<16x128xf32>
    %c125_i32_15 = arith.constant 125 : i32
    %134 = tpu.dynamic_rotate %1 by %c125_i32_15 dim 1 : vector<16x128xf32>, i32 -> vector<16x128xf32>
    %135 = vector.extract_strided_slice %2 {offsets = [25, 0], sizes = [1, 128], strides = [1, 1]} : vector<45x128xf32> to vector<1x128xf32>
    %136 = vector.broadcast %135 : vector<1x128xf32> to vector<16x128xf32>
    %137 = arith.mulf %134, %136 : vector<16x128xf32>
    %138 = arith.addf %133, %137 : vector<16x128xf32>
    %c124_i32_16 = arith.constant 124 : i32
    %139 = tpu.dynamic_rotate %1 by %c124_i32_16 dim 1 : vector<16x128xf32>, i32 -> vector<16x128xf32>
    %140 = vector.extract_strided_slice %2 {offsets = [26, 0], sizes = [1, 128], strides = [1, 1]} : vector<45x128xf32> to vector<1x128xf32>
    %141 = vector.broadcast %140 : vector<1x128xf32> to vector<16x128xf32>
    %142 = arith.mulf %139, %141 : vector<16x128xf32>
    %143 = arith.addf %138, %142 : vector<16x128xf32>
    %c123_i32_17 = arith.constant 123 : i32
    %144 = tpu.dynamic_rotate %1 by %c123_i32_17 dim 1 : vector<16x128xf32>, i32 -> vector<16x128xf32>
    %145 = vector.extract_strided_slice %2 {offsets = [27, 0], sizes = [1, 128], strides = [1, 1]} : vector<45x128xf32> to vector<1x128xf32>
    %146 = vector.broadcast %145 : vector<1x128xf32> to vector<16x128xf32>
    %147 = arith.mulf %144, %146 : vector<16x128xf32>
    %148 = arith.addf %143, %147 : vector<16x128xf32>
    %c122_i32_18 = arith.constant 122 : i32
    %149 = tpu.dynamic_rotate %1 by %c122_i32_18 dim 1 : vector<16x128xf32>, i32 -> vector<16x128xf32>
    %150 = vector.extract_strided_slice %2 {offsets = [28, 0], sizes = [1, 128], strides = [1, 1]} : vector<45x128xf32> to vector<1x128xf32>
    %151 = vector.broadcast %150 : vector<1x128xf32> to vector<16x128xf32>
    %152 = arith.mulf %149, %151 : vector<16x128xf32>
    %153 = arith.addf %148, %152 : vector<16x128xf32>
    %c121_i32_19 = arith.constant 121 : i32
    %154 = tpu.dynamic_rotate %1 by %c121_i32_19 dim 1 : vector<16x128xf32>, i32 -> vector<16x128xf32>
    %155 = vector.extract_strided_slice %2 {offsets = [29, 0], sizes = [1, 128], strides = [1, 1]} : vector<45x128xf32> to vector<1x128xf32>
    %156 = vector.broadcast %155 : vector<1x128xf32> to vector<16x128xf32>
    %157 = arith.mulf %154, %156 : vector<16x128xf32>
    %158 = arith.addf %153, %157 : vector<16x128xf32>
    %c7_i32_20 = arith.constant 7 : i32
    %159 = tpu.dynamic_rotate %9 by %c7_i32_20 dim 1 : vector<16x128xf32>, i32 -> vector<16x128xf32>
    %160 = vector.extract_strided_slice %2 {offsets = [30, 0], sizes = [1, 128], strides = [1, 1]} : vector<45x128xf32> to vector<1x128xf32>
    %161 = vector.broadcast %160 : vector<1x128xf32> to vector<16x128xf32>
    %162 = arith.mulf %159, %161 : vector<16x128xf32>
    %163 = arith.addf %158, %162 : vector<16x128xf32>
    %c6_i32_21 = arith.constant 6 : i32
    %164 = tpu.dynamic_rotate %9 by %c6_i32_21 dim 1 : vector<16x128xf32>, i32 -> vector<16x128xf32>
    %165 = vector.extract_strided_slice %2 {offsets = [31, 0], sizes = [1, 128], strides = [1, 1]} : vector<45x128xf32> to vector<1x128xf32>
    %166 = vector.broadcast %165 : vector<1x128xf32> to vector<16x128xf32>
    %167 = arith.mulf %164, %166 : vector<16x128xf32>
    %168 = arith.addf %163, %167 : vector<16x128xf32>
    %c5_i32_22 = arith.constant 5 : i32
    %169 = tpu.dynamic_rotate %9 by %c5_i32_22 dim 1 : vector<16x128xf32>, i32 -> vector<16x128xf32>
    %170 = vector.extract_strided_slice %2 {offsets = [32, 0], sizes = [1, 128], strides = [1, 1]} : vector<45x128xf32> to vector<1x128xf32>
    %171 = vector.broadcast %170 : vector<1x128xf32> to vector<16x128xf32>
    %172 = arith.mulf %169, %171 : vector<16x128xf32>
    %173 = arith.addf %168, %172 : vector<16x128xf32>
    %c4_i32_23 = arith.constant 4 : i32
    %174 = tpu.dynamic_rotate %9 by %c4_i32_23 dim 1 : vector<16x128xf32>, i32 -> vector<16x128xf32>
    %175 = vector.extract_strided_slice %2 {offsets = [33, 0], sizes = [1, 128], strides = [1, 1]} : vector<45x128xf32> to vector<1x128xf32>
    %176 = vector.broadcast %175 : vector<1x128xf32> to vector<16x128xf32>
    %177 = arith.mulf %174, %176 : vector<16x128xf32>
    %178 = arith.addf %173, %177 : vector<16x128xf32>
    %c3_i32_24 = arith.constant 3 : i32
    %179 = tpu.dynamic_rotate %9 by %c3_i32_24 dim 1 : vector<16x128xf32>, i32 -> vector<16x128xf32>
    %180 = vector.extract_strided_slice %2 {offsets = [34, 0], sizes = [1, 128], strides = [1, 1]} : vector<45x128xf32> to vector<1x128xf32>
    %181 = vector.broadcast %180 : vector<1x128xf32> to vector<16x128xf32>
    %182 = arith.mulf %179, %181 : vector<16x128xf32>
    %183 = arith.addf %178, %182 : vector<16x128xf32>
    %c2_i32_25 = arith.constant 2 : i32
    %184 = tpu.dynamic_rotate %9 by %c2_i32_25 dim 1 : vector<16x128xf32>, i32 -> vector<16x128xf32>
    %185 = vector.extract_strided_slice %2 {offsets = [35, 0], sizes = [1, 128], strides = [1, 1]} : vector<45x128xf32> to vector<1x128xf32>
    %186 = vector.broadcast %185 : vector<1x128xf32> to vector<16x128xf32>
    %187 = arith.mulf %184, %186 : vector<16x128xf32>
    %188 = arith.addf %183, %187 : vector<16x128xf32>
    %c1_i32_26 = arith.constant 1 : i32
    %189 = tpu.dynamic_rotate %9 by %c1_i32_26 dim 1 : vector<16x128xf32>, i32 -> vector<16x128xf32>
    %190 = vector.extract_strided_slice %2 {offsets = [36, 0], sizes = [1, 128], strides = [1, 1]} : vector<45x128xf32> to vector<1x128xf32>
    %191 = vector.broadcast %190 : vector<1x128xf32> to vector<16x128xf32>
    %192 = arith.mulf %189, %191 : vector<16x128xf32>
    %193 = arith.addf %188, %192 : vector<16x128xf32>
    %194 = vector.extract_strided_slice %2 {offsets = [37, 0], sizes = [1, 128], strides = [1, 1]} : vector<45x128xf32> to vector<1x128xf32>
    %195 = vector.broadcast %194 : vector<1x128xf32> to vector<16x128xf32>
    %196 = arith.mulf %9, %195 : vector<16x128xf32>
    %197 = arith.addf %193, %196 : vector<16x128xf32>
    %c127_i32_27 = arith.constant 127 : i32
    %198 = tpu.dynamic_rotate %9 by %c127_i32_27 dim 1 : vector<16x128xf32>, i32 -> vector<16x128xf32>
    %199 = vector.extract_strided_slice %2 {offsets = [38, 0], sizes = [1, 128], strides = [1, 1]} : vector<45x128xf32> to vector<1x128xf32>
    %200 = vector.broadcast %199 : vector<1x128xf32> to vector<16x128xf32>
    %201 = arith.mulf %198, %200 : vector<16x128xf32>
    %202 = arith.addf %197, %201 : vector<16x128xf32>
    %c126_i32_28 = arith.constant 126 : i32
    %203 = tpu.dynamic_rotate %9 by %c126_i32_28 dim 1 : vector<16x128xf32>, i32 -> vector<16x128xf32>
    %204 = vector.extract_strided_slice %2 {offsets = [39, 0], sizes = [1, 128], strides = [1, 1]} : vector<45x128xf32> to vector<1x128xf32>
    %205 = vector.broadcast %204 : vector<1x128xf32> to vector<16x128xf32>
    %206 = arith.mulf %203, %205 : vector<16x128xf32>
    %207 = arith.addf %202, %206 : vector<16x128xf32>
    %c125_i32_29 = arith.constant 125 : i32
    %208 = tpu.dynamic_rotate %9 by %c125_i32_29 dim 1 : vector<16x128xf32>, i32 -> vector<16x128xf32>
    %209 = vector.extract_strided_slice %2 {offsets = [40, 0], sizes = [1, 128], strides = [1, 1]} : vector<45x128xf32> to vector<1x128xf32>
    %210 = vector.broadcast %209 : vector<1x128xf32> to vector<16x128xf32>
    %211 = arith.mulf %208, %210 : vector<16x128xf32>
    %212 = arith.addf %207, %211 : vector<16x128xf32>
    %c124_i32_30 = arith.constant 124 : i32
    %213 = tpu.dynamic_rotate %9 by %c124_i32_30 dim 1 : vector<16x128xf32>, i32 -> vector<16x128xf32>
    %214 = vector.extract_strided_slice %2 {offsets = [41, 0], sizes = [1, 128], strides = [1, 1]} : vector<45x128xf32> to vector<1x128xf32>
    %215 = vector.broadcast %214 : vector<1x128xf32> to vector<16x128xf32>
    %216 = arith.mulf %213, %215 : vector<16x128xf32>
    %217 = arith.addf %212, %216 : vector<16x128xf32>
    %c123_i32_31 = arith.constant 123 : i32
    %218 = tpu.dynamic_rotate %9 by %c123_i32_31 dim 1 : vector<16x128xf32>, i32 -> vector<16x128xf32>
    %219 = vector.extract_strided_slice %2 {offsets = [42, 0], sizes = [1, 128], strides = [1, 1]} : vector<45x128xf32> to vector<1x128xf32>
    %220 = vector.broadcast %219 : vector<1x128xf32> to vector<16x128xf32>
    %221 = arith.mulf %218, %220 : vector<16x128xf32>
    %222 = arith.addf %217, %221 : vector<16x128xf32>
    %c122_i32_32 = arith.constant 122 : i32
    %223 = tpu.dynamic_rotate %9 by %c122_i32_32 dim 1 : vector<16x128xf32>, i32 -> vector<16x128xf32>
    %224 = vector.extract_strided_slice %2 {offsets = [43, 0], sizes = [1, 128], strides = [1, 1]} : vector<45x128xf32> to vector<1x128xf32>
    %225 = vector.broadcast %224 : vector<1x128xf32> to vector<16x128xf32>
    %226 = arith.mulf %223, %225 : vector<16x128xf32>
    %227 = arith.addf %222, %226 : vector<16x128xf32>
    %c121_i32_33 = arith.constant 121 : i32
    %228 = tpu.dynamic_rotate %9 by %c121_i32_33 dim 1 : vector<16x128xf32>, i32 -> vector<16x128xf32>
    %229 = vector.extract_strided_slice %2 {offsets = [44, 0], sizes = [1, 128], strides = [1, 1]} : vector<45x128xf32> to vector<1x128xf32>
    %230 = vector.broadcast %229 : vector<1x128xf32> to vector<16x128xf32>
    %231 = arith.mulf %228, %230 : vector<16x128xf32>
    %232 = arith.addf %227, %231 : vector<16x128xf32>
    %233 = vector.broadcast %3 : vector<1x128xf32> to vector<16x128xf32>
    %234 = arith.addf %232, %233 : vector<16x128xf32>
    %cst_34 = arith.constant 0.000000e+00 : f32
    %235 = vector.broadcast %cst_34 : f32 to vector<16x128xf32>
    %236 = arith.cmpf oge, %234, %235 : vector<16x128xf32>
    %cst_35 = arith.constant 2.000000e-01 : f32
    %237 = vector.broadcast %cst_35 : f32 to vector<16x128xf32>
    %238 = arith.mulf %237, %234 : vector<16x128xf32>
    %239 = arith.select %236, %234, %238 : vector<16x128xi1>, vector<16x128xf32>
    %c0_36 = arith.constant 0 : index
    %c0_37 = arith.constant 0 : index
    %240 = vector.load %arg4[%c0_36, %c0_37] : memref<45x128xf32, #tpu.memory_space<vmem>>, vector<45x128xf32>
    %c0_38 = arith.constant 0 : index
    %c0_39 = arith.constant 0 : index
    %241 = vector.load %arg5[%c0_38, %c0_39] : memref<1x128xf32, #tpu.memory_space<vmem>>, vector<1x128xf32>
    %242 = vector.extract_strided_slice %239 {offsets = [1, 0], sizes = [1, 128], strides = [1, 1]} : vector<16x128xf32> to vector<1x128xf32>
    %243 = vector.extract_strided_slice %239 {offsets = [0, 0], sizes = [15, 128], strides = [1, 1]} : vector<16x128xf32> to vector<15x128xf32>
    %244 = tpu.concatenate %242, %243 in 0 : vector<1x128xf32>, vector<15x128xf32> -> vector<16x128xf32>
    %245 = vector.extract_strided_slice %239 {offsets = [1, 0], sizes = [15, 128], strides = [1, 1]} : vector<16x128xf32> to vector<15x128xf32>
    %246 = vector.extract_strided_slice %239 {offsets = [14, 0], sizes = [1, 128], strides = [1, 1]} : vector<16x128xf32> to vector<1x128xf32>
    %247 = tpu.concatenate %245, %246 in 0 : vector<15x128xf32>, vector<1x128xf32> -> vector<16x128xf32>
    %cst_40 = arith.constant 0.000000e+00 : f32
    %248 = vector.broadcast %cst_40 : f32 to vector<16x128xf32>
    %c7_i32_41 = arith.constant 7 : i32
    %249 = tpu.dynamic_rotate %244 by %c7_i32_41 dim 1 : vector<16x128xf32>, i32 -> vector<16x128xf32>
    %250 = vector.extract_strided_slice %240 {offsets = [0, 0], sizes = [1, 128], strides = [1, 1]} : vector<45x128xf32> to vector<1x128xf32>
    %251 = vector.broadcast %250 : vector<1x128xf32> to vector<16x128xf32>
    %252 = arith.mulf %249, %251 : vector<16x128xf32>
    %253 = arith.addf %248, %252 : vector<16x128xf32>
    %c6_i32_42 = arith.constant 6 : i32
    %254 = tpu.dynamic_rotate %244 by %c6_i32_42 dim 1 : vector<16x128xf32>, i32 -> vector<16x128xf32>
    %255 = vector.extract_strided_slice %240 {offsets = [1, 0], sizes = [1, 128], strides = [1, 1]} : vector<45x128xf32> to vector<1x128xf32>
    %256 = vector.broadcast %255 : vector<1x128xf32> to vector<16x128xf32>
    %257 = arith.mulf %254, %256 : vector<16x128xf32>
    %258 = arith.addf %253, %257 : vector<16x128xf32>
    %c5_i32_43 = arith.constant 5 : i32
    %259 = tpu.dynamic_rotate %244 by %c5_i32_43 dim 1 : vector<16x128xf32>, i32 -> vector<16x128xf32>
    %260 = vector.extract_strided_slice %240 {offsets = [2, 0], sizes = [1, 128], strides = [1, 1]} : vector<45x128xf32> to vector<1x128xf32>
    %261 = vector.broadcast %260 : vector<1x128xf32> to vector<16x128xf32>
    %262 = arith.mulf %259, %261 : vector<16x128xf32>
    %263 = arith.addf %258, %262 : vector<16x128xf32>
    %c4_i32_44 = arith.constant 4 : i32
    %264 = tpu.dynamic_rotate %244 by %c4_i32_44 dim 1 : vector<16x128xf32>, i32 -> vector<16x128xf32>
    %265 = vector.extract_strided_slice %240 {offsets = [3, 0], sizes = [1, 128], strides = [1, 1]} : vector<45x128xf32> to vector<1x128xf32>
    %266 = vector.broadcast %265 : vector<1x128xf32> to vector<16x128xf32>
    %267 = arith.mulf %264, %266 : vector<16x128xf32>
    %268 = arith.addf %263, %267 : vector<16x128xf32>
    %c3_i32_45 = arith.constant 3 : i32
    %269 = tpu.dynamic_rotate %244 by %c3_i32_45 dim 1 : vector<16x128xf32>, i32 -> vector<16x128xf32>
    %270 = vector.extract_strided_slice %240 {offsets = [4, 0], sizes = [1, 128], strides = [1, 1]} : vector<45x128xf32> to vector<1x128xf32>
    %271 = vector.broadcast %270 : vector<1x128xf32> to vector<16x128xf32>
    %272 = arith.mulf %269, %271 : vector<16x128xf32>
    %273 = arith.addf %268, %272 : vector<16x128xf32>
    %c2_i32_46 = arith.constant 2 : i32
    %274 = tpu.dynamic_rotate %244 by %c2_i32_46 dim 1 : vector<16x128xf32>, i32 -> vector<16x128xf32>
    %275 = vector.extract_strided_slice %240 {offsets = [5, 0], sizes = [1, 128], strides = [1, 1]} : vector<45x128xf32> to vector<1x128xf32>
    %276 = vector.broadcast %275 : vector<1x128xf32> to vector<16x128xf32>
    %277 = arith.mulf %274, %276 : vector<16x128xf32>
    %278 = arith.addf %273, %277 : vector<16x128xf32>
    %c1_i32_47 = arith.constant 1 : i32
    %279 = tpu.dynamic_rotate %244 by %c1_i32_47 dim 1 : vector<16x128xf32>, i32 -> vector<16x128xf32>
    %280 = vector.extract_strided_slice %240 {offsets = [6, 0], sizes = [1, 128], strides = [1, 1]} : vector<45x128xf32> to vector<1x128xf32>
    %281 = vector.broadcast %280 : vector<1x128xf32> to vector<16x128xf32>
    %282 = arith.mulf %279, %281 : vector<16x128xf32>
    %283 = arith.addf %278, %282 : vector<16x128xf32>
    %284 = vector.extract_strided_slice %240 {offsets = [7, 0], sizes = [1, 128], strides = [1, 1]} : vector<45x128xf32> to vector<1x128xf32>
    %285 = vector.broadcast %284 : vector<1x128xf32> to vector<16x128xf32>
    %286 = arith.mulf %244, %285 : vector<16x128xf32>
    %287 = arith.addf %283, %286 : vector<16x128xf32>
    %c127_i32_48 = arith.constant 127 : i32
    %288 = tpu.dynamic_rotate %244 by %c127_i32_48 dim 1 : vector<16x128xf32>, i32 -> vector<16x128xf32>
    %289 = vector.extract_strided_slice %240 {offsets = [8, 0], sizes = [1, 128], strides = [1, 1]} : vector<45x128xf32> to vector<1x128xf32>
    %290 = vector.broadcast %289 : vector<1x128xf32> to vector<16x128xf32>
    %291 = arith.mulf %288, %290 : vector<16x128xf32>
    %292 = arith.addf %287, %291 : vector<16x128xf32>
    %c126_i32_49 = arith.constant 126 : i32
    %293 = tpu.dynamic_rotate %244 by %c126_i32_49 dim 1 : vector<16x128xf32>, i32 -> vector<16x128xf32>
    %294 = vector.extract_strided_slice %240 {offsets = [9, 0], sizes = [1, 128], strides = [1, 1]} : vector<45x128xf32> to vector<1x128xf32>
    %295 = vector.broadcast %294 : vector<1x128xf32> to vector<16x128xf32>
    %296 = arith.mulf %293, %295 : vector<16x128xf32>
    %297 = arith.addf %292, %296 : vector<16x128xf32>
    %c125_i32_50 = arith.constant 125 : i32
    %298 = tpu.dynamic_rotate %244 by %c125_i32_50 dim 1 : vector<16x128xf32>, i32 -> vector<16x128xf32>
    %299 = vector.extract_strided_slice %240 {offsets = [10, 0], sizes = [1, 128], strides = [1, 1]} : vector<45x128xf32> to vector<1x128xf32>
    %300 = vector.broadcast %299 : vector<1x128xf32> to vector<16x128xf32>
    %301 = arith.mulf %298, %300 : vector<16x128xf32>
    %302 = arith.addf %297, %301 : vector<16x128xf32>
    %c124_i32_51 = arith.constant 124 : i32
    %303 = tpu.dynamic_rotate %244 by %c124_i32_51 dim 1 : vector<16x128xf32>, i32 -> vector<16x128xf32>
    %304 = vector.extract_strided_slice %240 {offsets = [11, 0], sizes = [1, 128], strides = [1, 1]} : vector<45x128xf32> to vector<1x128xf32>
    %305 = vector.broadcast %304 : vector<1x128xf32> to vector<16x128xf32>
    %306 = arith.mulf %303, %305 : vector<16x128xf32>
    %307 = arith.addf %302, %306 : vector<16x128xf32>
    %c123_i32_52 = arith.constant 123 : i32
    %308 = tpu.dynamic_rotate %244 by %c123_i32_52 dim 1 : vector<16x128xf32>, i32 -> vector<16x128xf32>
    %309 = vector.extract_strided_slice %240 {offsets = [12, 0], sizes = [1, 128], strides = [1, 1]} : vector<45x128xf32> to vector<1x128xf32>
    %310 = vector.broadcast %309 : vector<1x128xf32> to vector<16x128xf32>
    %311 = arith.mulf %308, %310 : vector<16x128xf32>
    %312 = arith.addf %307, %311 : vector<16x128xf32>
    %c122_i32_53 = arith.constant 122 : i32
    %313 = tpu.dynamic_rotate %244 by %c122_i32_53 dim 1 : vector<16x128xf32>, i32 -> vector<16x128xf32>
    %314 = vector.extract_strided_slice %240 {offsets = [13, 0], sizes = [1, 128], strides = [1, 1]} : vector<45x128xf32> to vector<1x128xf32>
    %315 = vector.broadcast %314 : vector<1x128xf32> to vector<16x128xf32>
    %316 = arith.mulf %313, %315 : vector<16x128xf32>
    %317 = arith.addf %312, %316 : vector<16x128xf32>
    %c121_i32_54 = arith.constant 121 : i32
    %318 = tpu.dynamic_rotate %244 by %c121_i32_54 dim 1 : vector<16x128xf32>, i32 -> vector<16x128xf32>
    %319 = vector.extract_strided_slice %240 {offsets = [14, 0], sizes = [1, 128], strides = [1, 1]} : vector<45x128xf32> to vector<1x128xf32>
    %320 = vector.broadcast %319 : vector<1x128xf32> to vector<16x128xf32>
    %321 = arith.mulf %318, %320 : vector<16x128xf32>
    %322 = arith.addf %317, %321 : vector<16x128xf32>
    %c7_i32_55 = arith.constant 7 : i32
    %323 = tpu.dynamic_rotate %239 by %c7_i32_55 dim 1 : vector<16x128xf32>, i32 -> vector<16x128xf32>
    %324 = vector.extract_strided_slice %240 {offsets = [15, 0], sizes = [1, 128], strides = [1, 1]} : vector<45x128xf32> to vector<1x128xf32>
    %325 = vector.broadcast %324 : vector<1x128xf32> to vector<16x128xf32>
    %326 = arith.mulf %323, %325 : vector<16x128xf32>
    %327 = arith.addf %322, %326 : vector<16x128xf32>
    %c6_i32_56 = arith.constant 6 : i32
    %328 = tpu.dynamic_rotate %239 by %c6_i32_56 dim 1 : vector<16x128xf32>, i32 -> vector<16x128xf32>
    %329 = vector.extract_strided_slice %240 {offsets = [16, 0], sizes = [1, 128], strides = [1, 1]} : vector<45x128xf32> to vector<1x128xf32>
    %330 = vector.broadcast %329 : vector<1x128xf32> to vector<16x128xf32>
    %331 = arith.mulf %328, %330 : vector<16x128xf32>
    %332 = arith.addf %327, %331 : vector<16x128xf32>
    %c5_i32_57 = arith.constant 5 : i32
    %333 = tpu.dynamic_rotate %239 by %c5_i32_57 dim 1 : vector<16x128xf32>, i32 -> vector<16x128xf32>
    %334 = vector.extract_strided_slice %240 {offsets = [17, 0], sizes = [1, 128], strides = [1, 1]} : vector<45x128xf32> to vector<1x128xf32>
    %335 = vector.broadcast %334 : vector<1x128xf32> to vector<16x128xf32>
    %336 = arith.mulf %333, %335 : vector<16x128xf32>
    %337 = arith.addf %332, %336 : vector<16x128xf32>
    %c4_i32_58 = arith.constant 4 : i32
    %338 = tpu.dynamic_rotate %239 by %c4_i32_58 dim 1 : vector<16x128xf32>, i32 -> vector<16x128xf32>
    %339 = vector.extract_strided_slice %240 {offsets = [18, 0], sizes = [1, 128], strides = [1, 1]} : vector<45x128xf32> to vector<1x128xf32>
    %340 = vector.broadcast %339 : vector<1x128xf32> to vector<16x128xf32>
    %341 = arith.mulf %338, %340 : vector<16x128xf32>
    %342 = arith.addf %337, %341 : vector<16x128xf32>
    %c3_i32_59 = arith.constant 3 : i32
    %343 = tpu.dynamic_rotate %239 by %c3_i32_59 dim 1 : vector<16x128xf32>, i32 -> vector<16x128xf32>
    %344 = vector.extract_strided_slice %240 {offsets = [19, 0], sizes = [1, 128], strides = [1, 1]} : vector<45x128xf32> to vector<1x128xf32>
    %345 = vector.broadcast %344 : vector<1x128xf32> to vector<16x128xf32>
    %346 = arith.mulf %343, %345 : vector<16x128xf32>
    %347 = arith.addf %342, %346 : vector<16x128xf32>
    %c2_i32_60 = arith.constant 2 : i32
    %348 = tpu.dynamic_rotate %239 by %c2_i32_60 dim 1 : vector<16x128xf32>, i32 -> vector<16x128xf32>
    %349 = vector.extract_strided_slice %240 {offsets = [20, 0], sizes = [1, 128], strides = [1, 1]} : vector<45x128xf32> to vector<1x128xf32>
    %350 = vector.broadcast %349 : vector<1x128xf32> to vector<16x128xf32>
    %351 = arith.mulf %348, %350 : vector<16x128xf32>
    %352 = arith.addf %347, %351 : vector<16x128xf32>
    %c1_i32_61 = arith.constant 1 : i32
    %353 = tpu.dynamic_rotate %239 by %c1_i32_61 dim 1 : vector<16x128xf32>, i32 -> vector<16x128xf32>
    %354 = vector.extract_strided_slice %240 {offsets = [21, 0], sizes = [1, 128], strides = [1, 1]} : vector<45x128xf32> to vector<1x128xf32>
    %355 = vector.broadcast %354 : vector<1x128xf32> to vector<16x128xf32>
    %356 = arith.mulf %353, %355 : vector<16x128xf32>
    %357 = arith.addf %352, %356 : vector<16x128xf32>
    %358 = vector.extract_strided_slice %240 {offsets = [22, 0], sizes = [1, 128], strides = [1, 1]} : vector<45x128xf32> to vector<1x128xf32>
    %359 = vector.broadcast %358 : vector<1x128xf32> to vector<16x128xf32>
    %360 = arith.mulf %239, %359 : vector<16x128xf32>
    %361 = arith.addf %357, %360 : vector<16x128xf32>
    %c127_i32_62 = arith.constant 127 : i32
    %362 = tpu.dynamic_rotate %239 by %c127_i32_62 dim 1 : vector<16x128xf32>, i32 -> vector<16x128xf32>
    %363 = vector.extract_strided_slice %240 {offsets = [23, 0], sizes = [1, 128], strides = [1, 1]} : vector<45x128xf32> to vector<1x128xf32>
    %364 = vector.broadcast %363 : vector<1x128xf32> to vector<16x128xf32>
    %365 = arith.mulf %362, %364 : vector<16x128xf32>
    %366 = arith.addf %361, %365 : vector<16x128xf32>
    %c126_i32_63 = arith.constant 126 : i32
    %367 = tpu.dynamic_rotate %239 by %c126_i32_63 dim 1 : vector<16x128xf32>, i32 -> vector<16x128xf32>
    %368 = vector.extract_strided_slice %240 {offsets = [24, 0], sizes = [1, 128], strides = [1, 1]} : vector<45x128xf32> to vector<1x128xf32>
    %369 = vector.broadcast %368 : vector<1x128xf32> to vector<16x128xf32>
    %370 = arith.mulf %367, %369 : vector<16x128xf32>
    %371 = arith.addf %366, %370 : vector<16x128xf32>
    %c125_i32_64 = arith.constant 125 : i32
    %372 = tpu.dynamic_rotate %239 by %c125_i32_64 dim 1 : vector<16x128xf32>, i32 -> vector<16x128xf32>
    %373 = vector.extract_strided_slice %240 {offsets = [25, 0], sizes = [1, 128], strides = [1, 1]} : vector<45x128xf32> to vector<1x128xf32>
    %374 = vector.broadcast %373 : vector<1x128xf32> to vector<16x128xf32>
    %375 = arith.mulf %372, %374 : vector<16x128xf32>
    %376 = arith.addf %371, %375 : vector<16x128xf32>
    %c124_i32_65 = arith.constant 124 : i32
    %377 = tpu.dynamic_rotate %239 by %c124_i32_65 dim 1 : vector<16x128xf32>, i32 -> vector<16x128xf32>
    %378 = vector.extract_strided_slice %240 {offsets = [26, 0], sizes = [1, 128], strides = [1, 1]} : vector<45x128xf32> to vector<1x128xf32>
    %379 = vector.broadcast %378 : vector<1x128xf32> to vector<16x128xf32>
    %380 = arith.mulf %377, %379 : vector<16x128xf32>
    %381 = arith.addf %376, %380 : vector<16x128xf32>
    %c123_i32_66 = arith.constant 123 : i32
    %382 = tpu.dynamic_rotate %239 by %c123_i32_66 dim 1 : vector<16x128xf32>, i32 -> vector<16x128xf32>
    %383 = vector.extract_strided_slice %240 {offsets = [27, 0], sizes = [1, 128], strides = [1, 1]} : vector<45x128xf32> to vector<1x128xf32>
    %384 = vector.broadcast %383 : vector<1x128xf32> to vector<16x128xf32>
    %385 = arith.mulf %382, %384 : vector<16x128xf32>
    %386 = arith.addf %381, %385 : vector<16x128xf32>
    %c122_i32_67 = arith.constant 122 : i32
    %387 = tpu.dynamic_rotate %239 by %c122_i32_67 dim 1 : vector<16x128xf32>, i32 -> vector<16x128xf32>
    %388 = vector.extract_strided_slice %240 {offsets = [28, 0], sizes = [1, 128], strides = [1, 1]} : vector<45x128xf32> to vector<1x128xf32>
    %389 = vector.broadcast %388 : vector<1x128xf32> to vector<16x128xf32>
    %390 = arith.mulf %387, %389 : vector<16x128xf32>
    %391 = arith.addf %386, %390 : vector<16x128xf32>
    %c121_i32_68 = arith.constant 121 : i32
    %392 = tpu.dynamic_rotate %239 by %c121_i32_68 dim 1 : vector<16x128xf32>, i32 -> vector<16x128xf32>
    %393 = vector.extract_strided_slice %240 {offsets = [29, 0], sizes = [1, 128], strides = [1, 1]} : vector<45x128xf32> to vector<1x128xf32>
    %394 = vector.broadcast %393 : vector<1x128xf32> to vector<16x128xf32>
    %395 = arith.mulf %392, %394 : vector<16x128xf32>
    %396 = arith.addf %391, %395 : vector<16x128xf32>
    %c7_i32_69 = arith.constant 7 : i32
    %397 = tpu.dynamic_rotate %247 by %c7_i32_69 dim 1 : vector<16x128xf32>, i32 -> vector<16x128xf32>
    %398 = vector.extract_strided_slice %240 {offsets = [30, 0], sizes = [1, 128], strides = [1, 1]} : vector<45x128xf32> to vector<1x128xf32>
    %399 = vector.broadcast %398 : vector<1x128xf32> to vector<16x128xf32>
    %400 = arith.mulf %397, %399 : vector<16x128xf32>
    %401 = arith.addf %396, %400 : vector<16x128xf32>
    %c6_i32_70 = arith.constant 6 : i32
    %402 = tpu.dynamic_rotate %247 by %c6_i32_70 dim 1 : vector<16x128xf32>, i32 -> vector<16x128xf32>
    %403 = vector.extract_strided_slice %240 {offsets = [31, 0], sizes = [1, 128], strides = [1, 1]} : vector<45x128xf32> to vector<1x128xf32>
    %404 = vector.broadcast %403 : vector<1x128xf32> to vector<16x128xf32>
    %405 = arith.mulf %402, %404 : vector<16x128xf32>
    %406 = arith.addf %401, %405 : vector<16x128xf32>
    %c5_i32_71 = arith.constant 5 : i32
    %407 = tpu.dynamic_rotate %247 by %c5_i32_71 dim 1 : vector<16x128xf32>, i32 -> vector<16x128xf32>
    %408 = vector.extract_strided_slice %240 {offsets = [32, 0], sizes = [1, 128], strides = [1, 1]} : vector<45x128xf32> to vector<1x128xf32>
    %409 = vector.broadcast %408 : vector<1x128xf32> to vector<16x128xf32>
    %410 = arith.mulf %407, %409 : vector<16x128xf32>
    %411 = arith.addf %406, %410 : vector<16x128xf32>
    %c4_i32_72 = arith.constant 4 : i32
    %412 = tpu.dynamic_rotate %247 by %c4_i32_72 dim 1 : vector<16x128xf32>, i32 -> vector<16x128xf32>
    %413 = vector.extract_strided_slice %240 {offsets = [33, 0], sizes = [1, 128], strides = [1, 1]} : vector<45x128xf32> to vector<1x128xf32>
    %414 = vector.broadcast %413 : vector<1x128xf32> to vector<16x128xf32>
    %415 = arith.mulf %412, %414 : vector<16x128xf32>
    %416 = arith.addf %411, %415 : vector<16x128xf32>
    %c3_i32_73 = arith.constant 3 : i32
    %417 = tpu.dynamic_rotate %247 by %c3_i32_73 dim 1 : vector<16x128xf32>, i32 -> vector<16x128xf32>
    %418 = vector.extract_strided_slice %240 {offsets = [34, 0], sizes = [1, 128], strides = [1, 1]} : vector<45x128xf32> to vector<1x128xf32>
    %419 = vector.broadcast %418 : vector<1x128xf32> to vector<16x128xf32>
    %420 = arith.mulf %417, %419 : vector<16x128xf32>
    %421 = arith.addf %416, %420 : vector<16x128xf32>
    %c2_i32_74 = arith.constant 2 : i32
    %422 = tpu.dynamic_rotate %247 by %c2_i32_74 dim 1 : vector<16x128xf32>, i32 -> vector<16x128xf32>
    %423 = vector.extract_strided_slice %240 {offsets = [35, 0], sizes = [1, 128], strides = [1, 1]} : vector<45x128xf32> to vector<1x128xf32>
    %424 = vector.broadcast %423 : vector<1x128xf32> to vector<16x128xf32>
    %425 = arith.mulf %422, %424 : vector<16x128xf32>
    %426 = arith.addf %421, %425 : vector<16x128xf32>
    %c1_i32_75 = arith.constant 1 : i32
    %427 = tpu.dynamic_rotate %247 by %c1_i32_75 dim 1 : vector<16x128xf32>, i32 -> vector<16x128xf32>
    %428 = vector.extract_strided_slice %240 {offsets = [36, 0], sizes = [1, 128], strides = [1, 1]} : vector<45x128xf32> to vector<1x128xf32>
    %429 = vector.broadcast %428 : vector<1x128xf32> to vector<16x128xf32>
    %430 = arith.mulf %427, %429 : vector<16x128xf32>
    %431 = arith.addf %426, %430 : vector<16x128xf32>
    %432 = vector.extract_strided_slice %240 {offsets = [37, 0], sizes = [1, 128], strides = [1, 1]} : vector<45x128xf32> to vector<1x128xf32>
    %433 = vector.broadcast %432 : vector<1x128xf32> to vector<16x128xf32>
    %434 = arith.mulf %247, %433 : vector<16x128xf32>
    %435 = arith.addf %431, %434 : vector<16x128xf32>
    %c127_i32_76 = arith.constant 127 : i32
    %436 = tpu.dynamic_rotate %247 by %c127_i32_76 dim 1 : vector<16x128xf32>, i32 -> vector<16x128xf32>
    %437 = vector.extract_strided_slice %240 {offsets = [38, 0], sizes = [1, 128], strides = [1, 1]} : vector<45x128xf32> to vector<1x128xf32>
    %438 = vector.broadcast %437 : vector<1x128xf32> to vector<16x128xf32>
    %439 = arith.mulf %436, %438 : vector<16x128xf32>
    %440 = arith.addf %435, %439 : vector<16x128xf32>
    %c126_i32_77 = arith.constant 126 : i32
    %441 = tpu.dynamic_rotate %247 by %c126_i32_77 dim 1 : vector<16x128xf32>, i32 -> vector<16x128xf32>
    %442 = vector.extract_strided_slice %240 {offsets = [39, 0], sizes = [1, 128], strides = [1, 1]} : vector<45x128xf32> to vector<1x128xf32>
    %443 = vector.broadcast %442 : vector<1x128xf32> to vector<16x128xf32>
    %444 = arith.mulf %441, %443 : vector<16x128xf32>
    %445 = arith.addf %440, %444 : vector<16x128xf32>
    %c125_i32_78 = arith.constant 125 : i32
    %446 = tpu.dynamic_rotate %247 by %c125_i32_78 dim 1 : vector<16x128xf32>, i32 -> vector<16x128xf32>
    %447 = vector.extract_strided_slice %240 {offsets = [40, 0], sizes = [1, 128], strides = [1, 1]} : vector<45x128xf32> to vector<1x128xf32>
    %448 = vector.broadcast %447 : vector<1x128xf32> to vector<16x128xf32>
    %449 = arith.mulf %446, %448 : vector<16x128xf32>
    %450 = arith.addf %445, %449 : vector<16x128xf32>
    %c124_i32_79 = arith.constant 124 : i32
    %451 = tpu.dynamic_rotate %247 by %c124_i32_79 dim 1 : vector<16x128xf32>, i32 -> vector<16x128xf32>
    %452 = vector.extract_strided_slice %240 {offsets = [41, 0], sizes = [1, 128], strides = [1, 1]} : vector<45x128xf32> to vector<1x128xf32>
    %453 = vector.broadcast %452 : vector<1x128xf32> to vector<16x128xf32>
    %454 = arith.mulf %451, %453 : vector<16x128xf32>
    %455 = arith.addf %450, %454 : vector<16x128xf32>
    %c123_i32_80 = arith.constant 123 : i32
    %456 = tpu.dynamic_rotate %247 by %c123_i32_80 dim 1 : vector<16x128xf32>, i32 -> vector<16x128xf32>
    %457 = vector.extract_strided_slice %240 {offsets = [42, 0], sizes = [1, 128], strides = [1, 1]} : vector<45x128xf32> to vector<1x128xf32>
    %458 = vector.broadcast %457 : vector<1x128xf32> to vector<16x128xf32>
    %459 = arith.mulf %456, %458 : vector<16x128xf32>
    %460 = arith.addf %455, %459 : vector<16x128xf32>
    %c122_i32_81 = arith.constant 122 : i32
    %461 = tpu.dynamic_rotate %247 by %c122_i32_81 dim 1 : vector<16x128xf32>, i32 -> vector<16x128xf32>
    %462 = vector.extract_strided_slice %240 {offsets = [43, 0], sizes = [1, 128], strides = [1, 1]} : vector<45x128xf32> to vector<1x128xf32>
    %463 = vector.broadcast %462 : vector<1x128xf32> to vector<16x128xf32>
    %464 = arith.mulf %461, %463 : vector<16x128xf32>
    %465 = arith.addf %460, %464 : vector<16x128xf32>
    %c121_i32_82 = arith.constant 121 : i32
    %466 = tpu.dynamic_rotate %247 by %c121_i32_82 dim 1 : vector<16x128xf32>, i32 -> vector<16x128xf32>
    %467 = vector.extract_strided_slice %240 {offsets = [44, 0], sizes = [1, 128], strides = [1, 1]} : vector<45x128xf32> to vector<1x128xf32>
    %468 = vector.broadcast %467 : vector<1x128xf32> to vector<16x128xf32>
    %469 = arith.mulf %466, %468 : vector<16x128xf32>
    %470 = arith.addf %465, %469 : vector<16x128xf32>
    %471 = vector.broadcast %241 : vector<1x128xf32> to vector<16x128xf32>
    %472 = arith.addf %470, %471 : vector<16x128xf32>
    %473 = arith.addf %472, %1 : vector<16x128xf32>
    %c0_83 = arith.constant 0 : index
    %c0_84 = arith.constant 0 : index
    %c0_85 = arith.constant 0 : index
    %474 = vector.load %arg6[%c0_83, %c0_84, %c0_85] : memref<1x16x128xf32, #tpu.memory_space<vmem>>, vector<1x16x128xf32>
    %475 = vector.shape_cast %474 : vector<1x16x128xf32> to vector<16x128xf32>
    %476 = vector.shape_cast %473 : vector<16x128xf32> to vector<1x16x128xf32>
    tpu.vector_store %arg6[%c0_83, %c0_84, %c0_85], %476 {strides = array<i32>} : memref<1x16x128xf32, #tpu.memory_space<vmem>>, vector<1x16x128xf32>,
    return
  }
  func.func @transform_0(%arg0: i32) -> (i32, i32, i32) {
    %c0_i32 = arith.constant 0 : i32
    %c0_i32_0 = arith.constant 0 : i32
    %c0_i32_1 = arith.constant 0 : i32
    return %arg0, %c0_i32, %c0_i32_0 : i32, i32, i32
  }
  func.func @transform_1(%arg0: i32) -> (i32, i32) {
    %c0_i32 = arith.constant 0 : i32
    %c0_i32_0 = arith.constant 0 : i32
    %c0_i32_1 = arith.constant 0 : i32
    return %c0_i32, %c0_i32_0 : i32, i32
  }
  func.func @transform_2(%arg0: i32) -> (i32, i32) {
    %c0_i32 = arith.constant 0 : i32
    %c0_i32_0 = arith.constant 0 : i32
    %c0_i32_1 = arith.constant 0 : i32
    return %c0_i32, %c0_i32_0 : i32, i32
  }
  func.func @transform_3(%arg0: i32) -> (i32, i32) {
    %c0_i32 = arith.constant 0 : i32
    %c0_i32_0 = arith.constant 0 : i32
    %c0_i32_1 = arith.constant 0 : i32
    return %c0_i32, %c0_i32_0 : i32, i32
  }
  func.func @transform_4(%arg0: i32) -> (i32, i32) {
    %c0_i32 = arith.constant 0 : i32
    %c0_i32_0 = arith.constant 0 : i32
    %c0_i32_1 = arith.constant 0 : i32
    return %c0_i32, %c0_i32_0 : i32, i32
  }
  func.func @transform_5(%arg0: i32) -> (i32, i32, i32) {
    %c0_i32 = arith.constant 0 : i32
    %c0_i32_0 = arith.constant 0 : i32
    %c0_i32_1 = arith.constant 0 : i32
    return %arg0, %c0_i32, %c0_i32_0 : i32, i32, i32
  }
}

</mosaic_0001>

<llo_original>
// kernel: tpu_custom_call.1
$region0: #{tpu_custom_call.1}
  #allocation0 [shape = 'u32[]', space=smem, size = 0x4, offset = 0x4, fixed_abs, tag = 'smem constant byte address 0x4 - core index']
  #allocation1 [shape = 'u32[144,128]{1,0:T(1,128)}', space=vmem, size = 0x12000, scoped, tag = 'internal scratch']
  %s0 = inlined_call_operand.hbm [shape: f32[2,16,128], index: 0, kind: input, shape index: {}]
  %s1 = inlined_call_operand.hbm [shape: f32[45,128], index: 1, kind: input, shape index: {}]
  %s2 = inlined_call_operand.vmem [shape: f32[1,128], index: 2, kind: input, shape index: {}]
  %s3 = inlined_call_operand.hbm [shape: f32[45,128], index: 3, kind: input, shape index: {}]
  %s4 = inlined_call_operand.vmem [shape: f32[1,128], index: 4, kind: input, shape index: {}]
  %s5 = inlined_call_operand.hbm [shape: f32[2,16,128], index: 5, kind: output, shape index: {}]
  %s6 = sld [smem:[#allocation0]]
  $region65: #{tpu_custom_call.1} parent=0
    _
  %s8 = ssub.s32 1, %s6
  %s9 = scalar_select 0, %s8, %s6
  $region1: #{tpu_custom_call.1} parent=0
    #allocation2 [shape = 'u8[16384]{0}', space=vmem, size = 0x4000, scoped, tag = 'input window, operand 0']
    #allocation3 [shape = 's32[2]{0}', space=sflag, size = 0x8, scoped, tag = 'scoped memory for tpu_custom_call.1']
    #allocation4 [shape = 's32[2]{0}', space=sflag, size = 0x8, scoped, tag = 'scoped memory for tpu_custom_call.1']
    #allocation5 [shape = 'u8[24576]{0}', space=vmem, size = 0x6000, scoped, tag = 'input window, operand 1, single buffered']
    #allocation6 [shape = 's32[1]{0}', space=sflag, size = 0x4, scoped, tag = 'scoped memory for tpu_custom_call.1']
    #allocation7 [shape = 'u8[24576]{0}', space=vmem, size = 0x6000, scoped, tag = 'input window, operand 3, single buffered']
    #allocation8 [shape = 'u8[16384]{0}', space=vmem, size = 0x4000, scoped, tag = 'output window, operand 0']
    %10 = vsyncpa [#allocation3], 0
    %s11 = scalar_lea.sflag [#allocation3], 1
    %12 = vsyncpa %s11, 0
    %13 = vsyncpa [#allocation6], 0
    %14 = vsyncpa [#allocation4], 0
    %s15 = scalar_lea.sflag [#allocation4], 1
    %16 = vsyncpa %s15, 0
    loop: start=0, step=1, limit=4
    $region2: #{tpu_custom_call.1} parent=1 // loop_pre_header
      _
    $region3: #{tpu_custom_call.1} parent=1 // loop_header
      %s18 = sphi 0, %s22
      %p19 = scmp.ge.s32.totalorder %s18, 4
      %s28 = sphi 0, %s30
      %s31 = sphi 0, %s28
      %s32 = sphi 0, %s31
      %s48 = sphi 0, %s32
      %s52 = sphi 0, %s52
      %s54 = sphi 0, %s52
      %s55 = sphi 0, %s54
      %s69 = sphi 0, %s55
      %s73 = sphi 0, %s73
      %s75 = sphi 0, %s73
      %s76 = sphi 0, %s75
      %s90 = sphi 0, %s76
      %s94 = sphi 0, %s94
      %s96 = sphi 0, %s94
      %s97 = sphi 0, %s96
      %s111 = sphi 0, %s97
      %s115 = sphi 0, %s115
      %s117 = sphi 0, %s115
      %s118 = sphi 0, %s117
      %s132 = sphi 0, %s118
      %s138 = sphi 0, %s140
      %s141 = sphi 0, %s138
      %s142 = sphi 0, %s141
      %s158 = sphi 0, %s142
    $region4: #{tpu_custom_call.1} parent=1 // loop_header_branch
      %21 = sbr.rel (%p19) target = $region8
    $region5: #{tpu_custom_call.1} parent=1 // loop_body
      %s23 = ssub.s32 %s18, 1
      %s24 = ssub.s32 %s18, 2
      %s25 = sadd.s32 %s18, 1
      %s26 = ssub.s32 %s18, %s25
      %p27 = scmp.eq.s32.totalorder %s26, 0
      %s29 = sadd.s32 %s28, 1
      %s30 = scalar_select %p27, %s28, %s29
      %p33 = pneg %p27
      %p34 = scmp.eq.s32.totalorder %s18, 1
      %p35 = por %p33, %p34
      %p36 = scmp.ne.s32.totalorder %s28, %s31
      %p37 = scmp.eq.s32.totalorder %s18, 0
      %p38 = por %p36, %p37
      %p39 = scmp.ne.s32.totalorder %s28, %s31
      %p40 = scmp.eq.s32.totalorder %s23, 1
      %p41 = por %p39, %p40
      %p42 = scmp.ne.s32.totalorder %s31, %s32
      %p43 = scmp.eq.s32.totalorder %s23, 0
      %p44 = por %p42, %p43
      %p45 = scmp.ne.s32.totalorder %s31, %s32
      %p46 = scmp.eq.s32.totalorder %s24, 1
      %p47 = por %p45, %p46
      %p49 = scmp.ne.s32.totalorder %s32, %s48
      %p50 = scmp.eq.s32.totalorder %s24, 0
      %p51 = por %p49, %p50
      %s53 = sadd.s32 %s52, 1
      %p56 = scmp.eq.s32.totalorder %s18, 1
      %p57 = scmp.ne.s32.totalorder %s52, %s54
      %p58 = scmp.eq.s32.totalorder %s18, 0
      %p59 = por %p57, %p58
      %p60 = scmp.ne.s32.totalorder %s52, %s54
      %p61 = scmp.eq.s32.totalorder %s23, 1
      %p62 = por %p60, %p61
      %p63 = scmp.ne.s32.totalorder %s54, %s55
      %p64 = scmp.eq.s32.totalorder %s23, 0
      %p65 = por %p63, %p64
      %p66 = scmp.ne.s32.totalorder %s54, %s55
      %p67 = scmp.eq.s32.totalorder %s24, 1
      %p68 = por %p66, %p67
      %p70 = scmp.ne.s32.totalorder %s55, %s69
      %p71 = scmp.eq.s32.totalorder %s24, 0
      %p72 = por %p70, %p71
      %s74 = sadd.s32 %s73, 1
      %p77 = scmp.eq.s32.totalorder %s18, 1
      %p78 = scmp.ne.s32.totalorder %s73, %s75
      %p79 = scmp.eq.s32.totalorder %s18, 0
      %p80 = por %p78, %p79
      %p81 = scmp.ne.s32.totalorder %s73, %s75
      %p82 = scmp.eq.s32.totalorder %s23, 1
      %p83 = por %p81, %p82
      %p84 = scmp.ne.s32.totalorder %s75, %s76
      %p85 = scmp.eq.s32.totalorder %s23, 0
      %p86 = por %p84, %p85
      %p87 = scmp.ne.s32.totalorder %s75, %s76
      %p88 = scmp.eq.s32.totalorder %s24, 1
      %p89 = por %p87, %p88
      %p91 = scmp.ne.s32.totalorder %s76, %s90
      %p92 = scmp.eq.s32.totalorder %s24, 0
      %p93 = por %p91, %p92
      %s95 = sadd.s32 %s94, 1
      %p98 = scmp.eq.s32.totalorder %s18, 1
      %p99 = scmp.ne.s32.totalorder %s94, %s96
      %p100 = scmp.eq.s32.totalorder %s18, 0
      %p101 = por %p99, %p100
      %p102 = scmp.ne.s32.totalorder %s94, %s96
      %p103 = scmp.eq.s32.totalorder %s23, 1
      %p104 = por %p102, %p103
      %p105 = scmp.ne.s32.totalorder %s96, %s97
      %p106 = scmp.eq.s32.totalorder %s23, 0
      %p107 = por %p105, %p106
      %p108 = scmp.ne.s32.totalorder %s96, %s97
      %p109 = scmp.eq.s32.totalorder %s24, 1
      %p110 = por %p108, %p109
      %p112 = scmp.ne.s32.totalorder %s97, %s111
      %p113 = scmp.eq.s32.totalorder %s24, 0
      %p114 = por %p112, %p113
      %s116 = sadd.s32 %s115, 1
      %p119 = scmp.eq.s32.totalorder %s18, 1
      %p120 = scmp.ne.s32.totalorder %s115, %s117
      %p121 = scmp.eq.s32.totalorder %s18, 0
      %p122 = por %p120, %p121
      %p123 = scmp.ne.s32.totalorder %s115, %s117
      %p124 = scmp.eq.s32.totalorder %s23, 1
      %p125 = por %p123, %p124
      %p126 = scmp.ne.s32.totalorder %s117, %s118
      %p127 = scmp.eq.s32.totalorder %s23, 0
      %p128 = por %p126, %p127
      %p129 = scmp.ne.s32.totalorder %s117, %s118
      %p130 = scmp.eq.s32.totalorder %s24, 1
      %p131 = por %p129, %p130
      %p133 = scmp.ne.s32.totalorder %s118, %s132
      %p134 = scmp.eq.s32.totalorder %s24, 0
      %p135 = por %p133, %p134
      %s136 = ssub.s32 %s18, %s25
      %p137 = scmp.eq.s32.totalorder %s136, 0
      %s139 = sadd.s32 %s138, 1
      %s140 = scalar_select %p137, %s138, %s139
      %p143 = pneg %p137
      %p144 = scmp.eq.s32.totalorder %s18, 1
      %p145 = por %p143, %p144
      %p146 = scmp.ne.s32.totalorder %s138, %s141
      %p147 = scmp.eq.s32.totalorder %s18, 0
      %p148 = por %p146, %p147
      %p149 = scmp.ne.s32.totalorder %s138, %s141
      %p150 = scmp.eq.s32.totalorder %s23, 1
      %p151 = por %p149, %p150
      %p152 = scmp.ne.s32.totalorder %s141, %s142
      %p153 = scmp.eq.s32.totalorder %s23, 0
      %p154 = por %p152, %p153
      %p155 = scmp.ne.s32.totalorder %s141, %s142
      %p156 = scmp.eq.s32.totalorder %s24, 1
      %p157 = por %p155, %p156
      %p159 = scmp.ne.s32.totalorder %s142, %s158
      %p160 = scmp.eq.s32.totalorder %s24, 0
      %p161 = por %p159, %p160
      %p162 = scmp.le.s32.totalorder 1, %s18
      %p163 = scmp.lt.s32.totalorder %s18, 3
      %p164 = pnand %p162, %p163
      %p165 = pneg %p164
      // Predicated region
      $region9: #{tpu_custom_call.1} parent=5 // pred_check
        _
      $region10: #{tpu_custom_call.1} parent=5 // pred_check_branch
        %167 = sbr.rel (%p164) target = $region12
      $region11: #{tpu_custom_call.1} parent=5 // pred_region
        %s168 = ssub.s32 %s18, 1
        // Predicated region
        $region13: #{tpu_custom_call.1} parent=11 // pred_check
          %p169 = pneg %p65
        $region14: #{tpu_custom_call.1} parent=11 // pred_check_branch
          %171 = sbr.rel (%p169) target = $region16
        $region15: #{tpu_custom_call.1} parent=11 // pred_region
          %s173 = ssub.s32 768, 768
          %174 = vsyncadd [#allocation6], %s173
          %s175 = sshll.u32 [#allocation5], 4
          %s176 = int_to_ptr.vmem [resolvable:$true] %s175
          %181 = dma.hbm_to_vmem [thread:$0]  %s1, 768, %s176, [#allocation6], 128, 128, 8
        $region16: #{tpu_custom_call.1} parent=11 // pred_fallthru
          _
        // Predicated region
        $region17: #{tpu_custom_call.1} parent=11 // pred_check
          %p182 = pneg %p86
        $region18: #{tpu_custom_call.1} parent=11 // pred_check_branch
          %184 = sbr.rel (%p182) target = $region20
        $region19: #{tpu_custom_call.1} parent=11 // pred_region
          _
        $region20: #{tpu_custom_call.1} parent=11 // pred_fallthru
          _
        // Predicated region
        $region21: #{tpu_custom_call.1} parent=11 // pred_check
          %p185 = pneg %p107
        $region22: #{tpu_custom_call.1} parent=11 // pred_check_branch
          %187 = sbr.rel (%p185) target = $region24
        $region23: #{tpu_custom_call.1} parent=11 // pred_region
          %s189 = ssub.s32 768, 768
          %190 = vsyncadd [#allocation6], %s189
          %s191 = sshll.u32 [#allocation7], 4
          %s192 = int_to_ptr.vmem [resolvable:$true] %s191
          %197 = dma.hbm_to_vmem [thread:$0]  %s3, 768, %s192, [#allocation6], 128, 128, 8
        $region24: #{tpu_custom_call.1} parent=11 // pred_fallthru
          _
        // Predicated region
        $region25: #{tpu_custom_call.1} parent=11 // pred_check
          %p198 = pneg %p128
        $region26: #{tpu_custom_call.1} parent=11 // pred_check_branch
          %200 = sbr.rel (%p198) target = $region28
        $region27: #{tpu_custom_call.1} parent=11 // pred_region
          _
        $region28: #{tpu_custom_call.1} parent=11 // pred_fallthru
          _
      $region12: #{tpu_custom_call.1} parent=5 // pred_fallthru
        _
      %p201 = scmp.lt.s32.totalorder %s18, 2
      // Predicated region
      $region29: #{tpu_custom_call.1} parent=5 // pred_check
        %p202 = pneg %p201
      $region30: #{tpu_custom_call.1} parent=5 // pred_check_branch
        %204 = sbr.rel (%p202) target = $region32
      $region31: #{tpu_custom_call.1} parent=5 // pred_region
        // Predicated region
        $region33: #{tpu_custom_call.1} parent=31 // pred_check
          %p205 = pneg %p38
        $region34: #{tpu_custom_call.1} parent=31 // pred_check_branch
          %207 = sbr.rel (%p205) target = $region36
        $region35: #{tpu_custom_call.1} parent=31 // pred_region
          %s208 = sand.u32 %s28, 1
          %s209 = scalar_lea.sflag [#allocation3], %s208
          %s210 = sand.u32 %s28, 1
          %s211 = smul.addr %s210, 16
          %s212 = scalar_lea.vmem [#allocation2], %s211
          %s214 = ssub.s32 256, 256
          %215 = vsyncadd %s209, %s214
          %s216 = smul.addr %s18, 2
          %s217 = smul.addr %s216, 128
          %s218 = scalar_lea.hbm %s0, %s217
          %s219 = sshll.u32 %s212, 4
          %s220 = int_to_ptr.vmem [resolvable:$true] %s219
          %225 = dma.hbm_to_vmem [thread:$0]  %s218, 256, %s220, %s209, 128, 128, 8
        $region36: #{tpu_custom_call.1} parent=31 // pred_fallthru
          _
      $region32: #{tpu_custom_call.1} parent=5 // pred_fallthru
        _
      %p226 = scmp.le.s32.totalorder 1, %s18
      %p227 = scmp.lt.s32.totalorder %s18, 3
      %p228 = pnand %p226, %p227
      %p229 = pneg %p228
      // Predicated region
      $region37: #{tpu_custom_call.1} parent=5 // pred_check
        _
      $region38: #{tpu_custom_call.1} parent=5 // pred_check_branch
        %231 = sbr.rel (%p228) target = $region40
      $region39: #{tpu_custom_call.1} parent=5 // pred_region
        %s232 = ssub.s32 %s18, 1
        %s233 = sand.u32 %s31, 1
        %s234 = scalar_lea.sflag [#allocation3], %s233
        %s235 = sand.u32 %s31, 1
        %s236 = smul.addr %s235, 16
        %s237 = scalar_lea.vmem [#allocation2], %s236
        // Predicated region
        $region41: #{tpu_custom_call.1} parent=39 // pred_check
          %p238 = pneg %p44
        $region42: #{tpu_custom_call.1} parent=39 // pred_check_branch
          %240 = sbr.rel (%p238) target = $region44
        $region43: #{tpu_custom_call.1} parent=39 // pred_region
          %241 = dma.done %s234, 256
        $region44: #{tpu_custom_call.1} parent=39 // pred_fallthru
          _
        // Predicated region
        $region45: #{tpu_custom_call.1} parent=39 // pred_check
          %p242 = pneg %p65
        $region46: #{tpu_custom_call.1} parent=39 // pred_check_branch
          %244 = sbr.rel (%p242) target = $region48
        $region47: #{tpu_custom_call.1} parent=39 // pred_region
          %245 = dma.done [#allocation6], 768
        $region48: #{tpu_custom_call.1} parent=39 // pred_fallthru
          _
        // Predicated region
        $region49: #{tpu_custom_call.1} parent=39 // pred_check
          %p246 = pneg %p107
        $region50: #{tpu_custom_call.1} parent=39 // pred_check_branch
          %248 = sbr.rel (%p246) target = $region52
        $region51: #{tpu_custom_call.1} parent=39 // pred_region
          %249 = dma.done [#allocation6], 768
        $region52: #{tpu_custom_call.1} parent=39 // pred_fallthru
          _
        %s250 = sand.u32 %s31, 1
        %s251 = scalar_lea.sflag [#allocation3], %s250
        %s252 = sand.u32 %s31, 1
        %s253 = smul.addr %s252, 16
        %s254 = scalar_lea.vmem [#allocation2], %s253
        %p255 = pneg %p44
        %p256 = pneg %p41
        %p257 = pneg %p65
        %p258 = pneg %p62
        %p259 = pneg %p86
        %p260 = pneg %p83
        %p261 = pneg %p107
        %p262 = pneg %p104
        %p263 = pneg %p128
        %p264 = pneg %p125
        %p265 = pneg %p154
        %p266 = pneg %p151
        %s267 = sand.u32 %s141, 1
        %s268 = scalar_lea.sflag [#allocation4], %s267
        %s269 = sand.u32 %s141, 1
        %s270 = smul.addr %s269, 16
        %s271 = scalar_lea.vmem [#allocation8], %s270
        %v272 = vld [vmem:[%s237] sm:$0xff]
        %v273 = vld [vmem:[%s237 + $0x8] sm:$0xff]
        %v274 = vld [vmem:[#allocation5] sm:$0xff]
        %v275 = vld [vmem:[#allocation5 + $0x8] sm:$0xff]
        %v276 = vld [vmem:[#allocation5 + $0x10] sm:$0xff]
        %v277 = vld [vmem:[#allocation5 + $0x18] sm:$0xff]
        %v278 = vld [vmem:[#allocation5 + $0x20] sm:$0xff]
        %v279 = vld [vmem:[#allocation5 + $0x28] sm:$0x1f]
        %v280 = vld [vmem:[%s2] sm:$0x1]
        %v282 = vrot.slane %v272, 1
        %vm285 = vcmask 1040384
        %v286 = vrot.slane %v272, 7
        %v287 = vrot.slane %v273, 7
        %v288 = vsel %vm285, %v286, %v287
        %v291 = vsel %vm285, %v282, %v286
        %vm292 = vcmask 1046528
        %v293 = vrot.slane %v273, 1
        %v294 = vsel %vm292, %v282, %v293
        %v298 = vsel %vm292, %v293, %v287
        %299 = vrot.lane.b32.xlu0 %v291, 7
        %v300 = vpop.permute.xlu0 %299
        %301 = vrot.lane.b32.xlu0 %v288, 7
        %v302 = vpop.permute.xlu0 %301
        %v303 = vlaneseq
        %v304 = vshrl.u32 %v303, 7
        %v305 = vsub.s32 0, %v304
        %v306 = vrot.slane %v274, %v305
        %v307 = vmul.f32 %v300, %v306
        %v308 = vmul.f32 %v302, %v306
        %v309 = vadd.f32 %v307, 0.0
        %v310 = vadd.f32 %v308, 0.0
        %311 = vrot.lane.b32.xlu0 %v291, 6
        %v312 = vpop.permute.xlu0 %311
        %313 = vrot.lane.b32.xlu0 %v288, 6
        %v314 = vpop.permute.xlu0 %313
        %v315 = vlaneseq
        %v316 = vshrl.u32 %v315, 7
        %v317 = vsub.s32 1, %v316
        %v318 = vrot.slane %v274, %v317
        %v319 = vmul.f32 %v312, %v318
        %v320 = vmul.f32 %v314, %v318
        %v321 = vadd.f32 %v309, %v319
        %v322 = vadd.f32 %v310, %v320
        %323 = vrot.lane.b32.xlu0 %v291, 5
        %v324 = vpop.permute.xlu0 %323
        %325 = vrot.lane.b32.xlu0 %v288, 5
        %v326 = vpop.permute.xlu0 %325
        %v327 = vlaneseq
        %v328 = vshrl.u32 %v327, 7
        %v329 = vsub.s32 2, %v328
        %v330 = vrot.slane %v274, %v329
        %v331 = vmul.f32 %v324, %v330
        %v332 = vmul.f32 %v326, %v330
        %v333 = vadd.f32 %v321, %v331
        %v334 = vadd.f32 %v322, %v332
        %335 = vrot.lane.b32.xlu0 %v291, 4
        %v336 = vpop.permute.xlu0 %335
        %337 = vrot.lane.b32.xlu0 %v288, 4
        %v338 = vpop.permute.xlu0 %337
        %v339 = vlaneseq
        %v340 = vshrl.u32 %v339, 7
        %v341 = vsub.s32 3, %v340
        %v342 = vrot.slane %v274, %v341
        %v343 = vmul.f32 %v336, %v342
        %v344 = vmul.f32 %v338, %v342
        %v345 = vadd.f32 %v333, %v343
        %v346 = vadd.f32 %v334, %v344
        %347 = vrot.lane.b32.xlu0 %v291, 3
        %v348 = vpop.permute.xlu0 %347
        %349 = vrot.lane.b32.xlu0 %v288, 3
        %v350 = vpop.permute.xlu0 %349
        %v351 = vlaneseq
        %v352 = vshrl.u32 %v351, 7
        %v353 = vsub.s32 4, %v352
        %v354 = vrot.slane %v274, %v353
        %v355 = vmul.f32 %v348, %v354
        %v356 = vmul.f32 %v350, %v354
        %v357 = vadd.f32 %v345, %v355
        %v358 = vadd.f32 %v346, %v356
        %359 = vrot.lane.b32.xlu0 %v291, 2
        %v360 = vpop.permute.xlu0 %359
        %361 = vrot.lane.b32.xlu0 %v288, 2
        %v362 = vpop.permute.xlu0 %361
        %v363 = vlaneseq
        %v364 = vshrl.u32 %v363, 7
        %v365 = vsub.s32 5, %v364
        %v366 = vrot.slane %v274, %v365
        %v367 = vmul.f32 %v360, %v366
        %v368 = vmul.f32 %v362, %v366
        %v369 = vadd.f32 %v357, %v367
        %v370 = vadd.f32 %v358, %v368
        %371 = vrot.lane.b32.xlu0 %v291, 1
        %v372 = vpop.permute.xlu0 %371
        %373 = vrot.lane.b32.xlu0 %v288, 1
        %v374 = vpop.permute.xlu0 %373
        %v375 = vlaneseq
        %v376 = vshrl.u32 %v375, 7
        %v377 = vsub.s32 6, %v376
        %v378 = vrot.slane %v274, %v377
        %v379 = vmul.f32 %v372, %v378
        %v380 = vmul.f32 %v374, %v378
        %v381 = vadd.f32 %v369, %v379
        %v382 = vadd.f32 %v370, %v380
        %v383 = vlaneseq
        %v384 = vshrl.u32 %v383, 7
        %v385 = vsub.s32 7, %v384
        %v386 = vrot.slane %v274, %v385
        %v387 = vmul.f32 %v291, %v386
        %v388 = vmul.f32 %v288, %v386
        %v389 = vadd.f32 %v381, %v387
        %v390 = vadd.f32 %v382, %v388
        %391 = vrot.lane.b32.xlu0 %v291, 127
        %v392 = vpop.permute.xlu0 %391
        %393 = vrot.lane.b32.xlu0 %v288, 127
        %v394 = vpop.permute.xlu0 %393
        %v395 = vlaneseq
        %v396 = vshrl.u32 %v395, 7
        %v397 = vsub.s32 0, %v396
        %v398 = vrot.slane %v275, %v397
        %v399 = vmul.f32 %v392, %v398
        %v400 = vmul.f32 %v394, %v398
        %v401 = vadd.f32 %v389, %v399
        %v402 = vadd.f32 %v390, %v400
        %403 = vrot.lane.b32.xlu0 %v291, 126
        %v404 = vpop.permute.xlu0 %403
        %405 = vrot.lane.b32.xlu0 %v288, 126
        %v406 = vpop.permute.xlu0 %405
        %v407 = vlaneseq
        %v408 = vshrl.u32 %v407, 7
        %v409 = vsub.s32 1, %v408
        %v410 = vrot.slane %v275, %v409
        %v411 = vmul.f32 %v404, %v410
        %v412 = vmul.f32 %v406, %v410
        %v413 = vadd.f32 %v401, %v411
        %v414 = vadd.f32 %v402, %v412
        %415 = vrot.lane.b32.xlu0 %v291, 125
        %v416 = vpop.permute.xlu0 %415
        %417 = vrot.lane.b32.xlu0 %v288, 125
        %v418 = vpop.permute.xlu0 %417
        %v419 = vlaneseq
        %v420 = vshrl.u32 %v419, 7
        %v421 = vsub.s32 2, %v420
        %v422 = vrot.slane %v275, %v421
        %v423 = vmul.f32 %v416, %v422
        %v424 = vmul.f32 %v418, %v422
        %v425 = vadd.f32 %v413, %v423
        %v426 = vadd.f32 %v414, %v424
        %427 = vrot.lane.b32.xlu0 %v291, 124
        %v428 = vpop.permute.xlu0 %427
        %429 = vrot.lane.b32.xlu0 %v288, 124
        %v430 = vpop.permute.xlu0 %429
        %v431 = vlaneseq
        %v432 = vshrl.u32 %v431, 7
        %v433 = vsub.s32 3, %v432
        %v434 = vrot.slane %v275, %v433
        %v435 = vmul.f32 %v428, %v434
        %v436 = vmul.f32 %v430, %v434
        %v437 = vadd.f32 %v425, %v435
        %v438 = vadd.f32 %v426, %v436
        %439 = vrot.lane.b32.xlu0 %v291, 123
        %v440 = vpop.permute.xlu0 %439
        %441 = vrot.lane.b32.xlu0 %v288, 123
        %v442 = vpop.permute.xlu0 %441
        %v443 = vlaneseq
        %v444 = vshrl.u32 %v443, 7
        %v445 = vsub.s32 4, %v444
        %v446 = vrot.slane %v275, %v445
        %v447 = vmul.f32 %v440, %v446
        %v448 = vmul.f32 %v442, %v446
        %v449 = vadd.f32 %v437, %v447
        %v450 = vadd.f32 %v438, %v448
        %451 = vrot.lane.b32.xlu0 %v291, 122
        %v452 = vpop.permute.xlu0 %451
        %453 = vrot.lane.b32.xlu0 %v288, 122
        %v454 = vpop.permute.xlu0 %453
        %v455 = vlaneseq
        %v456 = vshrl.u32 %v455, 7
        %v457 = vsub.s32 5, %v456
        %v458 = vrot.slane %v275, %v457
        %v459 = vmul.f32 %v452, %v458
        %v460 = vmul.f32 %v454, %v458
        %v461 = vadd.f32 %v449, %v459
        %v462 = vadd.f32 %v450, %v460
        %463 = vrot.lane.b32.xlu0 %v291, 121
        %v464 = vpop.permute.xlu0 %463
        %465 = vrot.lane.b32.xlu0 %v288, 121
        %v466 = vpop.permute.xlu0 %465
        %v467 = vlaneseq
        %v468 = vshrl.u32 %v467, 7
        %v469 = vsub.s32 6, %v468
        %v470 = vrot.slane %v275, %v469
        %v471 = vmul.f32 %v464, %v470
        %v472 = vmul.f32 %v466, %v470
        %v473 = vadd.f32 %v461, %v471
        %v474 = vadd.f32 %v462, %v472
        %475 = vrot.lane.b32.xlu0 %v272, 7
        %v476 = vpop.permute.xlu0 %475
        %477 = vrot.lane.b32.xlu0 %v273, 7
        %v478 = vpop.permute.xlu0 %477
        %v479 = vlaneseq
        %v480 = vshrl.u32 %v479, 7
        %v481 = vsub.s32 7, %v480
        %v482 = vrot.slane %v275, %v481
        %v483 = vmul.f32 %v476, %v482
        %v484 = vmul.f32 %v478, %v482
        %v485 = vadd.f32 %v473, %v483
        %v486 = vadd.f32 %v474, %v484
        %487 = vrot.lane.b32.xlu0 %v272, 6
        %v488 = vpop.permute.xlu0 %487
        %489 = vrot.lane.b32.xlu0 %v273, 6
        %v490 = vpop.permute.xlu0 %489
        %v491 = vlaneseq
        %v492 = vshrl.u32 %v491, 7
        %v493 = vsub.s32 0, %v492
        %v494 = vrot.slane %v276, %v493
        %v495 = vmul.f32 %v488, %v494
        %v496 = vmul.f32 %v490, %v494
        %v497 = vadd.f32 %v485, %v495
        %v498 = vadd.f32 %v486, %v496
        %499 = vrot.lane.b32.xlu0 %v272, 5
        %v500 = vpop.permute.xlu0 %499
        %501 = vrot.lane.b32.xlu0 %v273, 5
        %v502 = vpop.permute.xlu0 %501
        %v503 = vlaneseq
        %v504 = vshrl.u32 %v503, 7
        %v505 = vsub.s32 1, %v504
        %v506 = vrot.slane %v276, %v505
        %v507 = vmul.f32 %v500, %v506
        %v508 = vmul.f32 %v502, %v506
        %v509 = vadd.f32 %v497, %v507
        %v510 = vadd.f32 %v498, %v508
        %511 = vrot.lane.b32.xlu0 %v272, 4
        %v512 = vpop.permute.xlu0 %511
        %513 = vrot.lane.b32.xlu0 %v273, 4
        %v514 = vpop.permute.xlu0 %513
        %v515 = vlaneseq
        %v516 = vshrl.u32 %v515, 7
        %v517 = vsub.s32 2, %v516
        %v518 = vrot.slane %v276, %v517
        %v519 = vmul.f32 %v512, %v518
        %v520 = vmul.f32 %v514, %v518
        %v521 = vadd.f32 %v509, %v519
        %v522 = vadd.f32 %v510, %v520
        %523 = vrot.lane.b32.xlu0 %v272, 3
        %v524 = vpop.permute.xlu0 %523
        %525 = vrot.lane.b32.xlu0 %v273, 3
        %v526 = vpop.permute.xlu0 %525
        %v527 = vlaneseq
        %v528 = vshrl.u32 %v527, 7
        %v529 = vsub.s32 3, %v528
        %v530 = vrot.slane %v276, %v529
        %v531 = vmul.f32 %v524, %v530
        %v532 = vmul.f32 %v526, %v530
        %v533 = vadd.f32 %v521, %v531
        %v534 = vadd.f32 %v522, %v532
        %535 = vrot.lane.b32.xlu0 %v272, 2
        %v536 = vpop.permute.xlu0 %535
        %537 = vrot.lane.b32.xlu0 %v273, 2
        %v538 = vpop.permute.xlu0 %537
        %v539 = vlaneseq
        %v540 = vshrl.u32 %v539, 7
        %v541 = vsub.s32 4, %v540
        %v542 = vrot.slane %v276, %v541
        %v543 = vmul.f32 %v536, %v542
        %v544 = vmul.f32 %v538, %v542
        %v545 = vadd.f32 %v533, %v543
        %v546 = vadd.f32 %v534, %v544
        %547 = vrot.lane.b32.xlu0 %v272, 1
        %v548 = vpop.permute.xlu0 %547
        %549 = vrot.lane.b32.xlu0 %v273, 1
        %v550 = vpop.permute.xlu0 %549
        %v551 = vlaneseq
        %v552 = vshrl.u32 %v551, 7
        %v553 = vsub.s32 5, %v552
        %v554 = vrot.slane %v276, %v553
        %v555 = vmul.f32 %v548, %v554
        %v556 = vmul.f32 %v550, %v554
        %v557 = vadd.f32 %v545, %v555
        %v558 = vadd.f32 %v546, %v556
        %v559 = vlaneseq
        %v560 = vshrl.u32 %v559, 7
        %v561 = vsub.s32 6, %v560
        %v562 = vrot.slane %v276, %v561
        %v563 = vmul.f32 %v272, %v562
        %v564 = vmul.f32 %v273, %v562
        %v565 = vadd.f32 %v557, %v563
        %v566 = vadd.f32 %v558, %v564
        %567 = vrot.lane.b32.xlu0 %v272, 127
        %v568 = vpop.permute.xlu0 %567
        %569 = vrot.lane.b32.xlu0 %v273, 127
        %v570 = vpop.permute.xlu0 %569
        %v571 = vlaneseq
        %v572 = vshrl.u32 %v571, 7
        %v573 = vsub.s32 7, %v572
        %v574 = vrot.slane %v276, %v573
        %v575 = vmul.f32 %v568, %v574
        %v576 = vmul.f32 %v570, %v574
        %v577 = vadd.f32 %v565, %v575
        %v578 = vadd.f32 %v566, %v576
        %579 = vrot.lane.b32.xlu0 %v272, 126
        %v580 = vpop.permute.xlu0 %579
        %581 = vrot.lane.b32.xlu0 %v273, 126
        %v582 = vpop.permute.xlu0 %581
        %v583 = vlaneseq
        %v584 = vshrl.u32 %v583, 7
        %v585 = vsub.s32 0, %v584
        %v586 = vrot.slane %v277, %v585
        %v587 = vmul.f32 %v580, %v586
        %v588 = vmul.f32 %v582, %v586
        %v589 = vadd.f32 %v577, %v587
        %v590 = vadd.f32 %v578, %v588
        %591 = vrot.lane.b32.xlu0 %v272, 125
        %v592 = vpop.permute.xlu0 %591
        %593 = vrot.lane.b32.xlu0 %v273, 125
        %v594 = vpop.permute.xlu0 %593
        %v595 = vlaneseq
        %v596 = vshrl.u32 %v595, 7
        %v597 = vsub.s32 1, %v596
        %v598 = vrot.slane %v277, %v597
        %v599 = vmul.f32 %v592, %v598
        %v600 = vmul.f32 %v594, %v598
        %v601 = vadd.f32 %v589, %v599
        %v602 = vadd.f32 %v590, %v600
        %603 = vrot.lane.b32.xlu0 %v272, 124
        %v604 = vpop.permute.xlu0 %603
        %605 = vrot.lane.b32.xlu0 %v273, 124
        %v606 = vpop.permute.xlu0 %605
        %v607 = vlaneseq
        %v608 = vshrl.u32 %v607, 7
        %v609 = vsub.s32 2, %v608
        %v610 = vrot.slane %v277, %v609
        %v611 = vmul.f32 %v604, %v610
        %v612 = vmul.f32 %v606, %v610
        %v613 = vadd.f32 %v601, %v611
        %v614 = vadd.f32 %v602, %v612
        %615 = vrot.lane.b32.xlu0 %v272, 123
        %v616 = vpop.permute.xlu0 %615
        %617 = vrot.lane.b32.xlu0 %v273, 123
        %v618 = vpop.permute.xlu0 %617
        %v619 = vlaneseq
        %v620 = vshrl.u32 %v619, 7
        %v621 = vsub.s32 3, %v620
        %v622 = vrot.slane %v277, %v621
        %v623 = vmul.f32 %v616, %v622
        %v624 = vmul.f32 %v618, %v622
        %v625 = vadd.f32 %v613, %v623
        %v626 = vadd.f32 %v614, %v624
        %627 = vrot.lane.b32.xlu0 %v272, 122
        %v628 = vpop.permute.xlu0 %627
        %629 = vrot.lane.b32.xlu0 %v273, 122
        %v630 = vpop.permute.xlu0 %629
        %v631 = vlaneseq
        %v632 = vshrl.u32 %v631, 7
        %v633 = vsub.s32 4, %v632
        %v634 = vrot.slane %v277, %v633
        %v635 = vmul.f32 %v628, %v634
        %v636 = vmul.f32 %v630, %v634
        %v637 = vadd.f32 %v625, %v635
        %v638 = vadd.f32 %v626, %v636
        %639 = vrot.lane.b32.xlu0 %v272, 121
        %v640 = vpop.permute.xlu0 %639
        %641 = vrot.lane.b32.xlu0 %v273, 121
        %v642 = vpop.permute.xlu0 %641
        %v643 = vlaneseq
        %v644 = vshrl.u32 %v643, 7
        %v645 = vsub.s32 5, %v644
        %v646 = vrot.slane %v277, %v645
        %v647 = vmul.f32 %v640, %v646
        %v648 = vmul.f32 %v642, %v646
        %v649 = vadd.f32 %v637, %v647
        %v650 = vadd.f32 %v638, %v648
        %651 = vrot.lane.b32.xlu0 %v294, 7
        %v652 = vpop.permute.xlu0 %651
        %653 = vrot.lane.b32.xlu0 %v298, 7
        %v654 = vpop.permute.xlu0 %653
        %v655 = vlaneseq
        %v656 = vshrl.u32 %v655, 7
        %v657 = vsub.s32 6, %v656
        %v658 = vrot.slane %v277, %v657
        %v659 = vmul.f32 %v652, %v658
        %v660 = vmul.f32 %v654, %v658
        %v661 = vadd.f32 %v649, %v659
        %v662 = vadd.f32 %v650, %v660
        %663 = vrot.lane.b32.xlu0 %v294, 6
        %v664 = vpop.permute.xlu0 %663
        %665 = vrot.lane.b32.xlu0 %v298, 6
        %v666 = vpop.permute.xlu0 %665
        %v667 = vlaneseq
        %v668 = vshrl.u32 %v667, 7
        %v669 = vsub.s32 7, %v668
        %v670 = vrot.slane %v277, %v669
        %v671 = vmul.f32 %v664, %v670
        %v672 = vmul.f32 %v666, %v670
        %v673 = vadd.f32 %v661, %v671
        %v674 = vadd.f32 %v662, %v672
        %675 = vrot.lane.b32.xlu0 %v294, 5
        %v676 = vpop.permute.xlu0 %675
        %677 = vrot.lane.b32.xlu0 %v298, 5
        %v678 = vpop.permute.xlu0 %677
        %v679 = vlaneseq
        %v680 = vshrl.u32 %v679, 7
        %v681 = vsub.s32 0, %v680
        %v682 = vrot.slane %v278, %v681
        %v683 = vmul.f32 %v676, %v682
        %v684 = vmul.f32 %v678, %v682
        %v685 = vadd.f32 %v673, %v683
        %v686 = vadd.f32 %v674, %v684
        %687 = vrot.lane.b32.xlu0 %v294, 4
        %v688 = vpop.permute.xlu0 %687
        %689 = vrot.lane.b32.xlu0 %v298, 4
        %v690 = vpop.permute.xlu0 %689
        %v691 = vlaneseq
        %v692 = vshrl.u32 %v691, 7
        %v693 = vsub.s32 1, %v692
        %v694 = vrot.slane %v278, %v693
        %v695 = vmul.f32 %v688, %v694
        %v696 = vmul.f32 %v690, %v694
        %v697 = vadd.f32 %v685, %v695
        %v698 = vadd.f32 %v686, %v696
        %699 = vrot.lane.b32.xlu0 %v294, 3
        %v700 = vpop.permute.xlu0 %699
        %701 = vrot.lane.b32.xlu0 %v298, 3
        %v702 = vpop.permute.xlu0 %701
        %v703 = vlaneseq
        %v704 = vshrl.u32 %v703, 7
        %v705 = vsub.s32 2, %v704
        %v706 = vrot.slane %v278, %v705
        %v707 = vmul.f32 %v700, %v706
        %v708 = vmul.f32 %v702, %v706
        %v709 = vadd.f32 %v697, %v707
        %v710 = vadd.f32 %v698, %v708
        %711 = vrot.lane.b32.xlu0 %v294, 2
        %v712 = vpop.permute.xlu0 %711
        %713 = vrot.lane.b32.xlu0 %v298, 2
        %v714 = vpop.permute.xlu0 %713
        %v715 = vlaneseq
        %v716 = vshrl.u32 %v715, 7
        %v717 = vsub.s32 3, %v716
        %v718 = vrot.slane %v278, %v717
        %v719 = vmul.f32 %v712, %v718
        %v720 = vmul.f32 %v714, %v718
        %v721 = vadd.f32 %v709, %v719
        %v722 = vadd.f32 %v710, %v720
        %723 = vrot.lane.b32.xlu0 %v294, 1
        %v724 = vpop.permute.xlu0 %723
        %725 = vrot.lane.b32.xlu0 %v298, 1
        %v726 = vpop.permute.xlu0 %725
        %v727 = vlaneseq
        %v728 = vshrl.u32 %v727, 7
        %v729 = vsub.s32 4, %v728
        %v730 = vrot.slane %v278, %v729
        %v731 = vmul.f32 %v724, %v730
        %v732 = vmul.f32 %v726, %v730
        %v733 = vadd.f32 %v721, %v731
        %v734 = vadd.f32 %v722, %v732
        %v735 = vlaneseq
        %v736 = vshrl.u32 %v735, 7
        %v737 = vsub.s32 5, %v736
        %v738 = vrot.slane %v278, %v737
        %v739 = vmul.f32 %v294, %v738
        %v740 = vmul.f32 %v298, %v738
        %v741 = vadd.f32 %v733, %v739
        %v742 = vadd.f32 %v734, %v740
        %743 = vrot.lane.b32.xlu0 %v294, 127
        %v744 = vpop.permute.xlu0 %743
        %745 = vrot.lane.b32.xlu0 %v298, 127
        %v746 = vpop.permute.xlu0 %745
        %v747 = vlaneseq
        %v748 = vshrl.u32 %v747, 7
        %v749 = vsub.s32 6, %v748
        %v750 = vrot.slane %v278, %v749
        %v751 = vmul.f32 %v744, %v750
        %v752 = vmul.f32 %v746, %v750
        %v753 = vadd.f32 %v741, %v751
        %v754 = vadd.f32 %v742, %v752
        %755 = vrot.lane.b32.xlu0 %v294, 126
        %v756 = vpop.permute.xlu0 %755
        %757 = vrot.lane.b32.xlu0 %v298, 126
        %v758 = vpop.permute.xlu0 %757
        %v759 = vlaneseq
        %v760 = vshrl.u32 %v759, 7
        %v761 = vsub.s32 7, %v760
        %v762 = vrot.slane %v278, %v761
        %v763 = vmul.f32 %v756, %v762
        %v764 = vmul.f32 %v758, %v762
        %v765 = vadd.f32 %v753, %v763
        %v766 = vadd.f32 %v754, %v764
        %767 = vrot.lane.b32.xlu0 %v294, 125
        %v768 = vpop.permute.xlu0 %767
        %769 = vrot.lane.b32.xlu0 %v298, 125
        %v770 = vpop.permute.xlu0 %769
        %v771 = vlaneseq
        %v772 = vshrl.u32 %v771, 7
        %v773 = vsub.s32 0, %v772
        %v774 = vrot.slane %v279, %v773
        %v775 = vmul.f32 %v768, %v774
        %v776 = vmul.f32 %v770, %v774
        %v777 = vadd.f32 %v765, %v775
        %v778 = vadd.f32 %v766, %v776
        %779 = vrot.lane.b32.xlu0 %v294, 124
        %v780 = vpop.permute.xlu0 %779
        %781 = vrot.lane.b32.xlu0 %v298, 124
        %v782 = vpop.permute.xlu0 %781
        %v783 = vlaneseq
        %v784 = vshrl.u32 %v783, 7
        %v785 = vsub.s32 1, %v784
        %v786 = vrot.slane %v279, %v785
        %v787 = vmul.f32 %v780, %v786
        %v788 = vmul.f32 %v782, %v786
        %v789 = vadd.f32 %v777, %v787
        %v790 = vadd.f32 %v778, %v788
        %791 = vrot.lane.b32.xlu0 %v294, 123
        %v792 = vpop.permute.xlu0 %791
        %793 = vrot.lane.b32.xlu0 %v298, 123
        %v794 = vpop.permute.xlu0 %793
        %v795 = vlaneseq
        %v796 = vshrl.u32 %v795, 7
        %v797 = vsub.s32 2, %v796
        %v798 = vrot.slane %v279, %v797
        %v799 = vmul.f32 %v792, %v798
        %v800 = vmul.f32 %v794, %v798
        %v801 = vadd.f32 %v789, %v799
        %v802 = vadd.f32 %v790, %v800
        %803 = vrot.lane.b32.xlu0 %v294, 122
        %v804 = vpop.permute.xlu0 %803
        %805 = vrot.lane.b32.xlu0 %v298, 122
        %v806 = vpop.permute.xlu0 %805
        %v807 = vlaneseq
        %v808 = vshrl.u32 %v807, 7
        %v809 = vsub.s32 3, %v808
        %v810 = vrot.slane %v279, %v809
        %v811 = vmul.f32 %v804, %v810
        %v812 = vmul.f32 %v806, %v810
        %v813 = vadd.f32 %v801, %v811
        %v814 = vadd.f32 %v802, %v812
        %815 = vrot.lane.b32.xlu0 %v294, 121
        %v816 = vpop.permute.xlu0 %815
        %817 = vrot.lane.b32.xlu0 %v298, 121
        %v818 = vpop.permute.xlu0 %817
        %v819 = vlaneseq
        %v820 = vshrl.u32 %v819, 7
        %v821 = vsub.s32 4, %v820
        %v822 = vrot.slane %v279, %v821
        %v823 = vmul.f32 %v816, %v822
        %v824 = vmul.f32 %v818, %v822
        %v825 = vadd.f32 %v813, %v823
        %v826 = vadd.f32 %v814, %v824
        %v828 = vlaneseq
        %v829 = vshrl.u32 %v828, 7
        %v830 = vsub.s32 0, %v829
        %v831 = vrot.slane %v280, %v830
        %v833 = vadd.f32 %v825, %v831
        %v834 = vadd.f32 %v826, %v831
        %vm835 = vcmp.ge.f32.partialorder %v833, 0.0
        %vm836 = vcmp.ge.f32.partialorder %v834, 0.0
        %v837 = vmul.f32 %v833, 0.2
        %v838 = vmul.f32 %v834, 0.2
        %v839 = vsel %vm835, %v833, %v837
        %v840 = vsel %vm836, %v834, %v838
        %v841 = vld [vmem:[#allocation7] sm:$0xff]
        %v842 = vld [vmem:[#allocation7 + $0x8] sm:$0xff]
        %v843 = vld [vmem:[#allocation7 + $0x10] sm:$0xff]
        %v844 = vld [vmem:[#allocation7 + $0x18] sm:$0xff]
        %v845 = vld [vmem:[#allocation7 + $0x20] sm:$0xff]
        %v846 = vld [vmem:[#allocation7 + $0x28] sm:$0x1f]
        %v847 = vld [vmem:[%s4] sm:$0x1]
        %v849 = vrot.slane %v839, 1
        %v852 = vrot.slane %v839, 7
        %v853 = vrot.slane %v840, 7
        %v854 = vsel %vm285, %v852, %v853
        %v857 = vsel %vm285, %v849, %v852
        %v858 = vrot.slane %v840, 1
        %v859 = vsel %vm292, %v849, %v858
        %v863 = vsel %vm292, %v858, %v853
        %864 = vrot.lane.b32.xlu0 %v857, 7
        %v865 = vpop.permute.xlu0 %864
        %866 = vrot.lane.b32.xlu0 %v854, 7
        %v867 = vpop.permute.xlu0 %866
        %v868 = vlaneseq
        %v869 = vshrl.u32 %v868, 7
        %v870 = vsub.s32 0, %v869
        %v871 = vrot.slane %v841, %v870
        %v872 = vmul.f32 %v865, %v871
        %v873 = vmul.f32 %v867, %v871
        %v874 = vadd.f32 %v872, 0.0
        %v875 = vadd.f32 %v873, 0.0
        %876 = vrot.lane.b32.xlu0 %v857, 6
        %v877 = vpop.permute.xlu0 %876
        %878 = vrot.lane.b32.xlu0 %v854, 6
        %v879 = vpop.permute.xlu0 %878
        %v880 = vlaneseq
        %v881 = vshrl.u32 %v880, 7
        %v882 = vsub.s32 1, %v881
        %v883 = vrot.slane %v841, %v882
        %v884 = vmul.f32 %v877, %v883
        %v885 = vmul.f32 %v879, %v883
        %v886 = vadd.f32 %v874, %v884
        %v887 = vadd.f32 %v875, %v885
        %888 = vrot.lane.b32.xlu0 %v857, 5
        %v889 = vpop.permute.xlu0 %888
        %890 = vrot.lane.b32.xlu0 %v854, 5
        %v891 = vpop.permute.xlu0 %890
        %v892 = vlaneseq
        %v893 = vshrl.u32 %v892, 7
        %v894 = vsub.s32 2, %v893
        %v895 = vrot.slane %v841, %v894
        %v896 = vmul.f32 %v889, %v895
        %v897 = vmul.f32 %v891, %v895
        %v898 = vadd.f32 %v886, %v896
        %v899 = vadd.f32 %v887, %v897
        %900 = vrot.lane.b32.xlu0 %v857, 4
        %v901 = vpop.permute.xlu0 %900
        %902 = vrot.lane.b32.xlu0 %v854, 4
        %v903 = vpop.permute.xlu0 %902
        %v904 = vlaneseq
        %v905 = vshrl.u32 %v904, 7
        %v906 = vsub.s32 3, %v905
        %v907 = vrot.slane %v841, %v906
        %v908 = vmul.f32 %v901, %v907
        %v909 = vmul.f32 %v903, %v907
        %v910 = vadd.f32 %v898, %v908
        %v911 = vadd.f32 %v899, %v909
        %912 = vrot.lane.b32.xlu0 %v857, 3
        %v913 = vpop.permute.xlu0 %912
        %914 = vrot.lane.b32.xlu0 %v854, 3
        %v915 = vpop.permute.xlu0 %914
        %v916 = vlaneseq
        %v917 = vshrl.u32 %v916, 7
        %v918 = vsub.s32 4, %v917
        %v919 = vrot.slane %v841, %v918
        %v920 = vmul.f32 %v913, %v919
        %v921 = vmul.f32 %v915, %v919
        %v922 = vadd.f32 %v910, %v920
        %v923 = vadd.f32 %v911, %v921
        %924 = vrot.lane.b32.xlu0 %v857, 2
        %v925 = vpop.permute.xlu0 %924
        %926 = vrot.lane.b32.xlu0 %v854, 2
        %v927 = vpop.permute.xlu0 %926
        %v928 = vlaneseq
        %v929 = vshrl.u32 %v928, 7
        %v930 = vsub.s32 5, %v929
        %v931 = vrot.slane %v841, %v930
        %v932 = vmul.f32 %v925, %v931
        %v933 = vmul.f32 %v927, %v931
        %v934 = vadd.f32 %v922, %v932
        %v935 = vadd.f32 %v923, %v933
        %936 = vrot.lane.b32.xlu0 %v857, 1
        %v937 = vpop.permute.xlu0 %936
        %938 = vrot.lane.b32.xlu0 %v854, 1
        %v939 = vpop.permute.xlu0 %938
        %v940 = vlaneseq
        %v941 = vshrl.u32 %v940, 7
        %v942 = vsub.s32 6, %v941
        %v943 = vrot.slane %v841, %v942
        %v944 = vmul.f32 %v937, %v943
        %v945 = vmul.f32 %v939, %v943
        %v946 = vadd.f32 %v934, %v944
        %v947 = vadd.f32 %v935, %v945
        %v948 = vlaneseq
        %v949 = vshrl.u32 %v948, 7
        %v950 = vsub.s32 7, %v949
        %v951 = vrot.slane %v841, %v950
        %v952 = vmul.f32 %v857, %v951
        %v953 = vmul.f32 %v854, %v951
        %v954 = vadd.f32 %v946, %v952
        %v955 = vadd.f32 %v947, %v953
        %956 = vrot.lane.b32.xlu0 %v857, 127
        %v957 = vpop.permute.xlu0 %956
        %958 = vrot.lane.b32.xlu0 %v854, 127
        %v959 = vpop.permute.xlu0 %958
        %v960 = vlaneseq
        %v961 = vshrl.u32 %v960, 7
        %v962 = vsub.s32 0, %v961
        %v963 = vrot.slane %v842, %v962
        %v964 = vmul.f32 %v957, %v963
        %v965 = vmul.f32 %v959, %v963
        %v966 = vadd.f32 %v954, %v964
        %v967 = vadd.f32 %v955, %v965
        %968 = vrot.lane.b32.xlu0 %v857, 126
        %v969 = vpop.permute.xlu0 %968
        %970 = vrot.lane.b32.xlu0 %v854, 126
        %v971 = vpop.permute.xlu0 %970
        %v972 = vlaneseq
        %v973 = vshrl.u32 %v972, 7
        %v974 = vsub.s32 1, %v973
        %v975 = vrot.slane %v842, %v974
        %v976 = vmul.f32 %v969, %v975
        %v977 = vmul.f32 %v971, %v975
        %v978 = vadd.f32 %v966, %v976
        %v979 = vadd.f32 %v967, %v977
        %980 = vrot.lane.b32.xlu0 %v857, 125
        %v981 = vpop.permute.xlu0 %980
        %982 = vrot.lane.b32.xlu0 %v854, 125
        %v983 = vpop.permute.xlu0 %982
        %v984 = vlaneseq
        %v985 = vshrl.u32 %v984, 7
        %v986 = vsub.s32 2, %v985
        %v987 = vrot.slane %v842, %v986
        %v988 = vmul.f32 %v981, %v987
        %v989 = vmul.f32 %v983, %v987
        %v990 = vadd.f32 %v978, %v988
        %v991 = vadd.f32 %v979, %v989
        %992 = vrot.lane.b32.xlu0 %v857, 124
        %v993 = vpop.permute.xlu0 %992
        %994 = vrot.lane.b32.xlu0 %v854, 124
        %v995 = vpop.permute.xlu0 %994
        %v996 = vlaneseq
        %v997 = vshrl.u32 %v996, 7
        %v998 = vsub.s32 3, %v997
        %v999 = vrot.slane %v842, %v998
        %v1000 = vmul.f32 %v993, %v999
        %v1001 = vmul.f32 %v995, %v999
        %v1002 = vadd.f32 %v990, %v1000
        %v1003 = vadd.f32 %v991, %v1001
        %1004 = vrot.lane.b32.xlu0 %v857, 123
        %v1005 = vpop.permute.xlu0 %1004
        %1006 = vrot.lane.b32.xlu0 %v854, 123
        %v1007 = vpop.permute.xlu0 %1006
        %v1008 = vlaneseq
        %v1009 = vshrl.u32 %v1008, 7
        %v1010 = vsub.s32 4, %v1009
        %v1011 = vrot.slane %v842, %v1010
        %v1012 = vmul.f32 %v1005, %v1011
        %v1013 = vmul.f32 %v1007, %v1011
        %v1014 = vadd.f32 %v1002, %v1012
        %v1015 = vadd.f32 %v1003, %v1013
        %1016 = vrot.lane.b32.xlu0 %v857, 122
        %v1017 = vpop.permute.xlu0 %1016
        %1018 = vrot.lane.b32.xlu0 %v854, 122
        %v1019 = vpop.permute.xlu0 %1018
        %v1020 = vlaneseq
        %v1021 = vshrl.u32 %v1020, 7
        %v1022 = vsub.s32 5, %v1021
        %v1023 = vrot.slane %v842, %v1022
        %v1024 = vmul.f32 %v1017, %v1023
        %v1025 = vmul.f32 %v1019, %v1023
        %v1026 = vadd.f32 %v1014, %v1024
        %v1027 = vadd.f32 %v1015, %v1025
        %1028 = vrot.lane.b32.xlu0 %v857, 121
        %v1029 = vpop.permute.xlu0 %1028
        %1030 = vrot.lane.b32.xlu0 %v854, 121
        %v1031 = vpop.permute.xlu0 %1030
        %v1032 = vlaneseq
        %v1033 = vshrl.u32 %v1032, 7
        %v1034 = vsub.s32 6, %v1033
        %v1035 = vrot.slane %v842, %v1034
        %v1036 = vmul.f32 %v1029, %v1035
        %v1037 = vmul.f32 %v1031, %v1035
        %v1038 = vadd.f32 %v1026, %v1036
        %v1039 = vadd.f32 %v1027, %v1037
        %1040 = vrot.lane.b32.xlu0 %v839, 7
        %v1041 = vpop.permute.xlu0 %1040
        %1042 = vrot.lane.b32.xlu0 %v840, 7
        %v1043 = vpop.permute.xlu0 %1042
        %v1044 = vlaneseq
        %v1045 = vshrl.u32 %v1044, 7
        %v1046 = vsub.s32 7, %v1045
        %v1047 = vrot.slane %v842, %v1046
        %v1048 = vmul.f32 %v1041, %v1047
        %v1049 = vmul.f32 %v1043, %v1047
        %v1050 = vadd.f32 %v1038, %v1048
        %v1051 = vadd.f32 %v1039, %v1049
        %1052 = vrot.lane.b32.xlu0 %v839, 6
        %v1053 = vpop.permute.xlu0 %1052
        %1054 = vrot.lane.b32.xlu0 %v840, 6
        %v1055 = vpop.permute.xlu0 %1054
        %v1056 = vlaneseq
        %v1057 = vshrl.u32 %v1056, 7
        %v1058 = vsub.s32 0, %v1057
        %v1059 = vrot.slane %v843, %v1058
        %v1060 = vmul.f32 %v1053, %v1059
        %v1061 = vmul.f32 %v1055, %v1059
        %v1062 = vadd.f32 %v1050, %v1060
        %v1063 = vadd.f32 %v1051, %v1061
        %1064 = vrot.lane.b32.xlu0 %v839, 5
        %v1065 = vpop.permute.xlu0 %1064
        %1066 = vrot.lane.b32.xlu0 %v840, 5
        %v1067 = vpop.permute.xlu0 %1066
        %v1068 = vlaneseq
        %v1069 = vshrl.u32 %v1068, 7
        %v1070 = vsub.s32 1, %v1069
        %v1071 = vrot.slane %v843, %v1070
        %v1072 = vmul.f32 %v1065, %v1071
        %v1073 = vmul.f32 %v1067, %v1071
        %v1074 = vadd.f32 %v1062, %v1072
        %v1075 = vadd.f32 %v1063, %v1073
        %1076 = vrot.lane.b32.xlu0 %v839, 4
        %v1077 = vpop.permute.xlu0 %1076
        %1078 = vrot.lane.b32.xlu0 %v840, 4
        %v1079 = vpop.permute.xlu0 %1078
        %v1080 = vlaneseq
        %v1081 = vshrl.u32 %v1080, 7
        %v1082 = vsub.s32 2, %v1081
        %v1083 = vrot.slane %v843, %v1082
        %v1084 = vmul.f32 %v1077, %v1083
        %v1085 = vmul.f32 %v1079, %v1083
        %v1086 = vadd.f32 %v1074, %v1084
        %v1087 = vadd.f32 %v1075, %v1085
        %1088 = vrot.lane.b32.xlu0 %v839, 3
        %v1089 = vpop.permute.xlu0 %1088
        %1090 = vrot.lane.b32.xlu0 %v840, 3
        %v1091 = vpop.permute.xlu0 %1090
        %v1092 = vlaneseq
        %v1093 = vshrl.u32 %v1092, 7
        %v1094 = vsub.s32 3, %v1093
        %v1095 = vrot.slane %v843, %v1094
        %v1096 = vmul.f32 %v1089, %v1095
        %v1097 = vmul.f32 %v1091, %v1095
        %v1098 = vadd.f32 %v1086, %v1096
        %v1099 = vadd.f32 %v1087, %v1097
        %1100 = vrot.lane.b32.xlu0 %v839, 2
        %v1101 = vpop.permute.xlu0 %1100
        %1102 = vrot.lane.b32.xlu0 %v840, 2
        %v1103 = vpop.permute.xlu0 %1102
        %v1104 = vlaneseq
        %v1105 = vshrl.u32 %v1104, 7
        %v1106 = vsub.s32 4, %v1105
        %v1107 = vrot.slane %v843, %v1106
        %v1108 = vmul.f32 %v1101, %v1107
        %v1109 = vmul.f32 %v1103, %v1107
        %v1110 = vadd.f32 %v1098, %v1108
        %v1111 = vadd.f32 %v1099, %v1109
        %1112 = vrot.lane.b32.xlu0 %v839, 1
        %v1113 = vpop.permute.xlu0 %1112
        %1114 = vrot.lane.b32.xlu0 %v840, 1
        %v1115 = vpop.permute.xlu0 %1114
        %v1116 = vlaneseq
        %v1117 = vshrl.u32 %v1116, 7
        %v1118 = vsub.s32 5, %v1117
        %v1119 = vrot.slane %v843, %v1118
        %v1120 = vmul.f32 %v1113, %v1119
        %v1121 = vmul.f32 %v1115, %v1119
        %v1122 = vadd.f32 %v1110, %v1120
        %v1123 = vadd.f32 %v1111, %v1121
        %v1124 = vlaneseq
        %v1125 = vshrl.u32 %v1124, 7
        %v1126 = vsub.s32 6, %v1125
        %v1127 = vrot.slane %v843, %v1126
        %v1128 = vmul.f32 %v839, %v1127
        %v1129 = vmul.f32 %v840, %v1127
        %v1130 = vadd.f32 %v1122, %v1128
        %v1131 = vadd.f32 %v1123, %v1129
        %1132 = vrot.lane.b32.xlu0 %v839, 127
        %v1133 = vpop.permute.xlu0 %1132
        %1134 = vrot.lane.b32.xlu0 %v840, 127
        %v1135 = vpop.permute.xlu0 %1134
        %v1136 = vlaneseq
        %v1137 = vshrl.u32 %v1136, 7
        %v1138 = vsub.s32 7, %v1137
        %v1139 = vrot.slane %v843, %v1138
        %v1140 = vmul.f32 %v1133, %v1139
        %v1141 = vmul.f32 %v1135, %v1139
        %v1142 = vadd.f32 %v1130, %v1140
        %v1143 = vadd.f32 %v1131, %v1141
        %1144 = vrot.lane.b32.xlu0 %v839, 126
        %v1145 = vpop.permute.xlu0 %1144
        %1146 = vrot.lane.b32.xlu0 %v840, 126
        %v1147 = vpop.permute.xlu0 %1146
        %v1148 = vlaneseq
        %v1149 = vshrl.u32 %v1148, 7
        %v1150 = vsub.s32 0, %v1149
        %v1151 = vrot.slane %v844, %v1150
        %v1152 = vmul.f32 %v1145, %v1151
        %v1153 = vmul.f32 %v1147, %v1151
        %v1154 = vadd.f32 %v1142, %v1152
        %v1155 = vadd.f32 %v1143, %v1153
        %1156 = vrot.lane.b32.xlu0 %v839, 125
        %v1157 = vpop.permute.xlu0 %1156
        %1158 = vrot.lane.b32.xlu0 %v840, 125
        %v1159 = vpop.permute.xlu0 %1158
        %v1160 = vlaneseq
        %v1161 = vshrl.u32 %v1160, 7
        %v1162 = vsub.s32 1, %v1161
        %v1163 = vrot.slane %v844, %v1162
        %v1164 = vmul.f32 %v1157, %v1163
        %v1165 = vmul.f32 %v1159, %v1163
        %v1166 = vadd.f32 %v1154, %v1164
        %v1167 = vadd.f32 %v1155, %v1165
        %1168 = vrot.lane.b32.xlu0 %v839, 124
        %v1169 = vpop.permute.xlu0 %1168
        %1170 = vrot.lane.b32.xlu0 %v840, 124
        %v1171 = vpop.permute.xlu0 %1170
        %v1172 = vlaneseq
        %v1173 = vshrl.u32 %v1172, 7
        %v1174 = vsub.s32 2, %v1173
        %v1175 = vrot.slane %v844, %v1174
        %v1176 = vmul.f32 %v1169, %v1175
        %v1177 = vmul.f32 %v1171, %v1175
        %v1178 = vadd.f32 %v1166, %v1176
        %v1179 = vadd.f32 %v1167, %v1177
        %1180 = vrot.lane.b32.xlu0 %v839, 123
        %v1181 = vpop.permute.xlu0 %1180
        %1182 = vrot.lane.b32.xlu0 %v840, 123
        %v1183 = vpop.permute.xlu0 %1182
        %v1184 = vlaneseq
        %v1185 = vshrl.u32 %v1184, 7
        %v1186 = vsub.s32 3, %v1185
        %v1187 = vrot.slane %v844, %v1186
        %v1188 = vmul.f32 %v1181, %v1187
        %v1189 = vmul.f32 %v1183, %v1187
        %v1190 = vadd.f32 %v1178, %v1188
        %v1191 = vadd.f32 %v1179, %v1189
        %1192 = vrot.lane.b32.xlu0 %v839, 122
        %v1193 = vpop.permute.xlu0 %1192
        %1194 = vrot.lane.b32.xlu0 %v840, 122
        %v1195 = vpop.permute.xlu0 %1194
        %v1196 = vlaneseq
        %v1197 = vshrl.u32 %v1196, 7
        %v1198 = vsub.s32 4, %v1197
        %v1199 = vrot.slane %v844, %v1198
        %v1200 = vmul.f32 %v1193, %v1199
        %v1201 = vmul.f32 %v1195, %v1199
        %v1202 = vadd.f32 %v1190, %v1200
        %v1203 = vadd.f32 %v1191, %v1201
        %1204 = vrot.lane.b32.xlu0 %v839, 121
        %v1205 = vpop.permute.xlu0 %1204
        %1206 = vrot.lane.b32.xlu0 %v840, 121
        %v1207 = vpop.permute.xlu0 %1206
        %v1208 = vlaneseq
        %v1209 = vshrl.u32 %v1208, 7
        %v1210 = vsub.s32 5, %v1209
        %v1211 = vrot.slane %v844, %v1210
        %v1212 = vmul.f32 %v1205, %v1211
        %v1213 = vmul.f32 %v1207, %v1211
        %v1214 = vadd.f32 %v1202, %v1212
        %v1215 = vadd.f32 %v1203, %v1213
        %1216 = vrot.lane.b32.xlu0 %v859, 7
        %v1217 = vpop.permute.xlu0 %1216
        %1218 = vrot.lane.b32.xlu0 %v863, 7
        %v1219 = vpop.permute.xlu0 %1218
        %v1220 = vlaneseq
        %v1221 = vshrl.u32 %v1220, 7
        %v1222 = vsub.s32 6, %v1221
        %v1223 = vrot.slane %v844, %v1222
        %v1224 = vmul.f32 %v1217, %v1223
        %v1225 = vmul.f32 %v1219, %v1223
        %v1226 = vadd.f32 %v1214, %v1224
        %v1227 = vadd.f32 %v1215, %v1225
        %1228 = vrot.lane.b32.xlu0 %v859, 6
        %v1229 = vpop.permute.xlu0 %1228
        %1230 = vrot.lane.b32.xlu0 %v863, 6
        %v1231 = vpop.permute.xlu0 %1230
        %v1232 = vlaneseq
        %v1233 = vshrl.u32 %v1232, 7
        %v1234 = vsub.s32 7, %v1233
        %v1235 = vrot.slane %v844, %v1234
        %v1236 = vmul.f32 %v1229, %v1235
        %v1237 = vmul.f32 %v1231, %v1235
        %v1238 = vadd.f32 %v1226, %v1236
        %v1239 = vadd.f32 %v1227, %v1237
        %1240 = vrot.lane.b32.xlu0 %v859, 5
        %v1241 = vpop.permute.xlu0 %1240
        %1242 = vrot.lane.b32.xlu0 %v863, 5
        %v1243 = vpop.permute.xlu0 %1242
        %v1244 = vlaneseq
        %v1245 = vshrl.u32 %v1244, 7
        %v1246 = vsub.s32 0, %v1245
        %v1247 = vrot.slane %v845, %v1246
        %v1248 = vmul.f32 %v1241, %v1247
        %v1249 = vmul.f32 %v1243, %v1247
        %v1250 = vadd.f32 %v1238, %v1248
        %v1251 = vadd.f32 %v1239, %v1249
        %1252 = vrot.lane.b32.xlu0 %v859, 4
        %v1253 = vpop.permute.xlu0 %1252
        %1254 = vrot.lane.b32.xlu0 %v863, 4
        %v1255 = vpop.permute.xlu0 %1254
        %v1256 = vlaneseq
        %v1257 = vshrl.u32 %v1256, 7
        %v1258 = vsub.s32 1, %v1257
        %v1259 = vrot.slane %v845, %v1258
        %v1260 = vmul.f32 %v1253, %v1259
        %v1261 = vmul.f32 %v1255, %v1259
        %v1262 = vadd.f32 %v1250, %v1260
        %v1263 = vadd.f32 %v1251, %v1261
        %1264 = vrot.lane.b32.xlu0 %v859, 3
        %v1265 = vpop.permute.xlu0 %1264
        %1266 = vrot.lane.b32.xlu0 %v863, 3
        %v1267 = vpop.permute.xlu0 %1266
        %v1268 = vlaneseq
        %v1269 = vshrl.u32 %v1268, 7
        %v1270 = vsub.s32 2, %v1269
        %v1271 = vrot.slane %v845, %v1270
        %v1272 = vmul.f32 %v1265, %v1271
        %v1273 = vmul.f32 %v1267, %v1271
        %v1274 = vadd.f32 %v1262, %v1272
        %v1275 = vadd.f32 %v1263, %v1273
        %1276 = vrot.lane.b32.xlu0 %v859, 2
        %v1277 = vpop.permute.xlu0 %1276
        %1278 = vrot.lane.b32.xlu0 %v863, 2
        %v1279 = vpop.permute.xlu0 %1278
        %v1280 = vlaneseq
        %v1281 = vshrl.u32 %v1280, 7
        %v1282 = vsub.s32 3, %v1281
        %v1283 = vrot.slane %v845, %v1282
        %v1284 = vmul.f32 %v1277, %v1283
        %v1285 = vmul.f32 %v1279, %v1283
        %v1286 = vadd.f32 %v1274, %v1284
        %v1287 = vadd.f32 %v1275, %v1285
        %1288 = vrot.lane.b32.xlu0 %v859, 1
        %v1289 = vpop.permute.xlu0 %1288
        %1290 = vrot.lane.b32.xlu0 %v863, 1
        %v1291 = vpop.permute.xlu0 %1290
        %v1292 = vlaneseq
        %v1293 = vshrl.u32 %v1292, 7
        %v1294 = vsub.s32 4, %v1293
        %v1295 = vrot.slane %v845, %v1294
        %v1296 = vmul.f32 %v1289, %v1295
        %v1297 = vmul.f32 %v1291, %v1295
        %v1298 = vadd.f32 %v1286, %v1296
        %v1299 = vadd.f32 %v1287, %v1297
        %v1300 = vlaneseq
        %v1301 = vshrl.u32 %v1300, 7
        %v1302 = vsub.s32 5, %v1301
        %v1303 = vrot.slane %v845, %v1302
        %v1304 = vmul.f32 %v859, %v1303
        %v1305 = vmul.f32 %v863, %v1303
        %v1306 = vadd.f32 %v1298, %v1304
        %v1307 = vadd.f32 %v1299, %v1305
        %1308 = vrot.lane.b32.xlu0 %v859, 127
        %v1309 = vpop.permute.xlu0 %1308
        %1310 = vrot.lane.b32.xlu0 %v863, 127
        %v1311 = vpop.permute.xlu0 %1310
        %v1312 = vlaneseq
        %v1313 = vshrl.u32 %v1312, 7
        %v1314 = vsub.s32 6, %v1313
        %v1315 = vrot.slane %v845, %v1314
        %v1316 = vmul.f32 %v1309, %v1315
        %v1317 = vmul.f32 %v1311, %v1315
        %v1318 = vadd.f32 %v1306, %v1316
        %v1319 = vadd.f32 %v1307, %v1317
        %1320 = vrot.lane.b32.xlu0 %v859, 126
        %v1321 = vpop.permute.xlu0 %1320
        %1322 = vrot.lane.b32.xlu0 %v863, 126
        %v1323 = vpop.permute.xlu0 %1322
        %v1324 = vlaneseq
        %v1325 = vshrl.u32 %v1324, 7
        %v1326 = vsub.s32 7, %v1325
        %v1327 = vrot.slane %v845, %v1326
        %v1328 = vmul.f32 %v1321, %v1327
        %v1329 = vmul.f32 %v1323, %v1327
        %v1330 = vadd.f32 %v1318, %v1328
        %v1331 = vadd.f32 %v1319, %v1329
        %1332 = vrot.lane.b32.xlu0 %v859, 125
        %v1333 = vpop.permute.xlu0 %1332
        %1334 = vrot.lane.b32.xlu0 %v863, 125
        %v1335 = vpop.permute.xlu0 %1334
        %v1336 = vlaneseq
        %v1337 = vshrl.u32 %v1336, 7
        %v1338 = vsub.s32 0, %v1337
        %v1339 = vrot.slane %v846, %v1338
        %v1340 = vmul.f32 %v1333, %v1339
        %v1341 = vmul.f32 %v1335, %v1339
        %v1342 = vadd.f32 %v1330, %v1340
        %v1343 = vadd.f32 %v1331, %v1341
        %1344 = vrot.lane.b32.xlu0 %v859, 124
        %v1345 = vpop.permute.xlu0 %1344
        %1346 = vrot.lane.b32.xlu0 %v863, 124
        %v1347 = vpop.permute.xlu0 %1346
        %v1348 = vlaneseq
        %v1349 = vshrl.u32 %v1348, 7
        %v1350 = vsub.s32 1, %v1349
        %v1351 = vrot.slane %v846, %v1350
        %v1352 = vmul.f32 %v1345, %v1351
        %v1353 = vmul.f32 %v1347, %v1351
        %v1354 = vadd.f32 %v1342, %v1352
        %v1355 = vadd.f32 %v1343, %v1353
        %1356 = vrot.lane.b32.xlu0 %v859, 123
        %v1357 = vpop.permute.xlu0 %1356
        %1358 = vrot.lane.b32.xlu0 %v863, 123
        %v1359 = vpop.permute.xlu0 %1358
        %v1360 = vlaneseq
        %v1361 = vshrl.u32 %v1360, 7
        %v1362 = vsub.s32 2, %v1361
        %v1363 = vrot.slane %v846, %v1362
        %v1364 = vmul.f32 %v1357, %v1363
        %v1365 = vmul.f32 %v1359, %v1363
        %v1366 = vadd.f32 %v1354, %v1364
        %v1367 = vadd.f32 %v1355, %v1365
        %1368 = vrot.lane.b32.xlu0 %v859, 122
        %v1369 = vpop.permute.xlu0 %1368
        %1370 = vrot.lane.b32.xlu0 %v863, 122
        %v1371 = vpop.permute.xlu0 %1370
        %v1372 = vlaneseq
        %v1373 = vshrl.u32 %v1372, 7
        %v1374 = vsub.s32 3, %v1373
        %v1375 = vrot.slane %v846, %v1374
        %v1376 = vmul.f32 %v1369, %v1375
        %v1377 = vmul.f32 %v1371, %v1375
        %v1378 = vadd.f32 %v1366, %v1376
        %v1379 = vadd.f32 %v1367, %v1377
        %1380 = vrot.lane.b32.xlu0 %v859, 121
        %v1381 = vpop.permute.xlu0 %1380
        %1382 = vrot.lane.b32.xlu0 %v863, 121
        %v1383 = vpop.permute.xlu0 %1382
        %v1384 = vlaneseq
        %v1385 = vshrl.u32 %v1384, 7
        %v1386 = vsub.s32 4, %v1385
        %v1387 = vrot.slane %v846, %v1386
        %v1388 = vmul.f32 %v1381, %v1387
        %v1389 = vmul.f32 %v1383, %v1387
        %v1390 = vadd.f32 %v1378, %v1388
        %v1391 = vadd.f32 %v1379, %v1389
        %v1393 = vlaneseq
        %v1394 = vshrl.u32 %v1393, 7
        %v1395 = vsub.s32 0, %v1394
        %v1396 = vrot.slane %v847, %v1395
        %v1398 = vadd.f32 %v1390, %v1396
        %v1399 = vadd.f32 %v1391, %v1396
        %v1400 = vadd.f32 %v1398, %v272
        %v1401 = vadd.f32 %v1399, %v273
        %1402 = vst [vmem:[%s271] sm:$0xff] %v1400
        %1403 = vst [vmem:[%s271 + $0x8] sm:$0xff] %v1401
        %s1404 = sand.u32 %s141, 1
        %s1405 = scalar_lea.sflag [#allocation4], %s1404
        %s1406 = sand.u32 %s141, 1
        %s1407 = smul.addr %s1406, 16
        %s1408 = scalar_lea.vmem [#allocation8], %s1407
        // Predicated region
        $region53: #{tpu_custom_call.1} parent=39 // pred_check
          %p1409 = pneg %p151
        $region54: #{tpu_custom_call.1} parent=39 // pred_check_branch
          %1411 = sbr.rel (%p1409) target = $region56
        $region55: #{tpu_custom_call.1} parent=39 // pred_region
          %s1413 = ssub.s32 256, 256
          %1414 = vsyncadd %s1405, %s1413
          %s1415 = smul.addr %s23, 2
          %s1416 = smul.addr %s1415, 128
          %s1417 = scalar_lea.hbm %s5, %s1416
          %s1418 = sshll.u32 %s1408, 4
          %s1419 = int_to_ptr.vmem [resolvable:$true] %s1418
          %1424 = dma.vmem_to_hbm [thread:$0]  %s1419, 256, %s1417, %s1405, 128, 128, 8
        $region56: #{tpu_custom_call.1} parent=39 // pred_fallthru
          _
      $region40: #{tpu_custom_call.1} parent=5 // pred_fallthru
        _
      %p1425 = scmp.le.s32.totalorder 2, %s18
      // Predicated region
      $region57: #{tpu_custom_call.1} parent=5 // pred_check
        %p1426 = pneg %p1425
      $region58: #{tpu_custom_call.1} parent=5 // pred_check_branch
        %1428 = sbr.rel (%p1426) target = $region60
      $region59: #{tpu_custom_call.1} parent=5 // pred_region
        %s1429 = ssub.s32 %s18, 2
        // Predicated region
        $region61: #{tpu_custom_call.1} parent=59 // pred_check
          %p1430 = pneg %p157
        $region62: #{tpu_custom_call.1} parent=59 // pred_check_branch
          %1432 = sbr.rel (%p1430) target = $region64
        $region63: #{tpu_custom_call.1} parent=59 // pred_region
          %s1433 = sand.u32 %s142, 1
          %s1434 = scalar_lea.sflag [#allocation4], %s1433
          %s1435 = sand.u32 %s142, 1
          %s1436 = smul.addr %s1435, 16
          %s1437 = scalar_lea.vmem [#allocation8], %s1436
          %1438 = dma.done %s1434, 256
        $region64: #{tpu_custom_call.1} parent=59 // pred_fallthru
          _
      $region60: #{tpu_custom_call.1} parent=5 // pred_fallthru
        _
    $region6: #{tpu_custom_call.1} parent=1 // loop_footer
      %s22 = sadd.s32 1, %s18
    $region7: #{tpu_custom_call.1} parent=1 // loop_footer_branch
      %17 = sbr.rel target = $region3
    $region8: #{tpu_custom_call.1} parent=1 // loop_exit
      _
    %1439 = vsyncpa [#allocation3], 1
    %s1440 = scalar_lea.sflag [#allocation3], 1
    %1441 = vsyncpa %s1440, 1
    %1442 = vsyncpa [#allocation6], 1
    %1443 = vsyncpa [#allocation4], 1
    %s1444 = scalar_lea.sflag [#allocation4], 1
    %1445 = vsyncpa %s1444, 1

</llo_original>
